<compile_context>
chip_gen: v7x
topology: tpu7x:2x2x1
jax: 0.10.0
libtpu: 0.0.40
codegen_flags: <defaults>
</compile_context>

<pallas_src>
import functools

import numpy as np
import jax
import jax.numpy as jnp
from jax.experimental import pallas as pl
from jax.experimental.pallas import tpu as pltpu


# ----------------------------------------------------------------------------
# Deterministic parameter construction (librosa mel filterbank + hann window).
# ----------------------------------------------------------------------------
def _hz_to_mel(freqs):
    freqs = np.asarray(freqs, dtype=np.float64)
    f_min, f_sp = 0.0, 200.0 / 3
    mels = (freqs - f_min) / f_sp
    min_log_hz = 1000.0
    min_log_mel = (min_log_hz - f_min) / f_sp
    logstep = np.log(6.4) / 27.0
    log_t = freqs >= min_log_hz
    mels = np.where(log_t, min_log_mel + np.log(np.maximum(freqs, 1e-10) / min_log_hz) / logstep, mels)
    return mels


def _mel_to_hz(mels):
    mels = np.asarray(mels, dtype=np.float64)
    f_min, f_sp = 0.0, 200.0 / 3
    freqs = f_min + f_sp * mels
    min_log_hz = 1000.0
    min_log_mel = (min_log_hz - f_min) / f_sp
    logstep = np.log(6.4) / 27.0
    log_t = mels >= min_log_mel
    freqs = np.where(log_t, min_log_hz * np.exp(logstep * (mels - min_log_mel)), freqs)
    return freqs


def librosa_mel_fn(sr, n_fft, n_mels, fmin, fmax):
    """Numpy reimplementation of librosa.filters.mel (slaney scale + slaney norm)."""
    if fmax is None:
        fmax = float(sr) / 2
    n_freq = n_fft // 2 + 1
    fftfreqs = np.linspace(0.0, float(sr) / 2, n_freq)
    mel_min, mel_max = _hz_to_mel(fmin), _hz_to_mel(fmax)
    mel_pts = np.linspace(mel_min, mel_max, n_mels + 2)
    mel_f = _mel_to_hz(mel_pts)
    fdiff = np.diff(mel_f)
    ramps = mel_f[:, None] - fftfreqs[None, :]
    weights = np.zeros((n_mels, n_freq), dtype=np.float64)
    for i in range(n_mels):
        lower = -ramps[i] / fdiff[i]
        upper = ramps[i + 2] / fdiff[i + 1]
        weights[i] = np.maximum(0.0, np.minimum(lower, upper))
    enorm = 2.0 / (mel_f[2:n_mels + 2] - mel_f[:n_mels])
    weights *= enorm[:, None]
    return weights.astype(np.float32)


def hann_window(win_length):
    # torch.hann_window(periodic=True)
    n = np.arange(win_length, dtype=np.float64)
    return (0.5 - 0.5 * np.cos(2.0 * np.pi * n / win_length)).astype(np.float32)


def _round_up(x, m):
    return ((x + m - 1) // m) * m


def _build_tables(n_fft, sampling_rate, n_mel, fmin, fmax):
    """Windowed [cos | -sin] DFT basis (lane-padded) and lane-padded mel^T, both bf16-ready."""
    n_freq = n_fft // 2 + 1
    f_pad = _round_up(n_freq, 128)
    m_pad = _round_up(n_mel, 128)
    win = hann_window(n_fft).astype(np.float64)
    n = np.arange(n_fft, dtype=np.float64)[:, None]
    k = np.arange(n_freq, dtype=np.float64)[None, :]
    ang = 2.0 * np.pi * n * k / n_fft
    basis = np.zeros((n_fft, 2 * f_pad), dtype=np.float32)
    basis[:, :n_freq] = (win[:, None] * np.cos(ang)).astype(np.float32)                 # real part
    basis[:, f_pad:f_pad + n_freq] = (win[:, None] * -np.sin(ang)).astype(np.float32)   # imag part
    mel = librosa_mel_fn(sampling_rate, n_fft, n_mel, fmin, fmax)                       # (n_mel, n_freq)
    mel_t = np.zeros((f_pad, m_pad), dtype=np.float32)
    mel_t[:n_freq, :n_mel] = mel.T
    return basis, mel_t, n_freq, f_pad, m_pad


# ----------------------------------------------------------------------------
# Pallas kernel: per (batch, frame-tile) -> assemble frames from the contiguous
# audio window, one K=n_fft DFT matmul, magnitude, bf16 mel matmul, log10.
# ----------------------------------------------------------------------------
def audio2mel_kernel(main_ref, tail_ref, basis_ref, melt_ref, out_ref, *, r, n_freq_pad):
    tf = main_ref.shape[0]
    # Contiguous audio rows covering all frames of this tile (+ overlap into the next tile).
    ext = jnp.concatenate([main_ref[...], tail_ref[...]], axis=0)          # (tf + rw, hop) f32
    # Frame i, hop-chunk j = rows[i + j]; assemble the full (tf, n_fft) LHS with r shifted
    # slices (static offsets) concatenated along lanes, then cast to bf16 once.
    chunks = [ext[j:j + tf, :] for j in range(r)]
    frames = jnp.concatenate(chunks, axis=1).astype(jnp.bfloat16)          # (tf, n_fft) bf16

    # Single K = n_fft MXU matmul against the windowed [cos | -sin] basis, f32 accumulation.
    spec = jnp.dot(frames, basis_ref[...], preferred_element_type=jnp.float32)   # (tf, 2*f_pad)
    re = spec[:, :n_freq_pad]
    im = spec[:, n_freq_pad:]
    mag = jnp.sqrt(re * re + im * im)                                      # f32 (tf, f_pad)

    # Mel projection in bf16 (f32 accumulation), then log10 epilogue in f32.
    mel = jnp.dot(mag.astype(jnp.bfloat16), melt_ref[...],
                  preferred_element_type=jnp.float32)                      # (tf, m_pad)
    out_ref[...] = jnp.log10(jnp.maximum(mel, 1e-5)).astype(out_ref.dtype)


class Audio2Mel:
    def __init__(self, n_fft=1024, hop_length=256, win_length=1024,
                 sampling_rate=22050, n_mel_channels=80, mel_fmin=0.0, mel_fmax=None,
                 frame_tile=512):
        assert win_length == n_fft, "kernel assumes win_length == n_fft (module defaults)"
        assert n_fft % hop_length == 0, "kernel assumes hop_length divides n_fft"
        # TODO(synk): general (non-divisor) hop_length would need a per-sample offset DMA path.
        self.n_fft = n_fft
        self.hop_length = hop_length
        self.win_length = win_length
        self.n_mel_channels = n_mel_channels
        self.r = n_fft // hop_length
        self.frame_tile = frame_tile

        basis, mel_t, n_freq, f_pad, m_pad = _build_tables(
            n_fft, sampling_rate, n_mel_channels, mel_fmin, mel_fmax)
        self.n_freq, self.n_freq_pad, self.n_mel_pad = n_freq, f_pad, m_pad
        self.basis = jnp.asarray(basis, dtype=jnp.bfloat16)      # (n_fft, 2*f_pad), window folded in
        self.mel_t = jnp.asarray(mel_t, dtype=jnp.bfloat16)      # (f_pad, m_pad)

        # f32 copies kept only for the pure-JAX reference check.
        self.window = jnp.asarray(hann_window(n_fft))
        self.mel_basis = jnp.asarray(
            librosa_mel_fn(sampling_rate, n_fft, n_mel_channels, mel_fmin, mel_fmax))

    def __call__(self, audio):
        # audio: (B, 1, T) float32, same as the PyTorch module.
        n_fft, hop, r = self.n_fft, self.hop_length, self.r
        p = (n_fft - hop) // 2
        a = jnp.pad(audio, ((0, 0), (0, 0), (p, p)), mode="reflect")[:, 0, :]   # (B, Tp)
        B, Tp = a.shape
        n_frames = 1 + (Tp - n_fft) // hop

        # Frame-tile size: balanced tiles, multiple of 16 sublanes; keep >= 2 grid points at
        # B == 1 so both v7x TensorCores get work.
        n_tiles = max(1, -(-n_frames // self.frame_tile))
        if B == 1 and n_tiles == 1 and n_frames > 16:
            n_tiles = 2
        tf = _round_up(-(-n_frames // n_tiles), 16)
        n_tiles = -(-n_frames // tf)
        n_frames_pad = n_tiles * tf

        # Audio rows: one extra rw-row "tail" per batch so the last tile's overlap is in bounds.
        rw = _round_up(r, 8)
        n_rows = n_frames_pad + rw
        a = jnp.pad(a, ((0, 0), (0, n_rows * hop - Tp)))
        rows = a.reshape(B, n_rows, hop)                                        # ~1x audio in HBM

        f_pad, m_pad = self.n_freq_pad, self.n_mel_pad
        kernel = functools.partial(audio2mel_kernel, r=r, n_freq_pad=f_pad)

        flops = 2 * B * n_frames_pad * (n_fft * 2 * f_pad + f_pad * m_pad)
        transcendentals = B * n_frames_pad * (f_pad + m_pad)
        bytes_accessed = (rows.size * 4 + self.basis.size * 2 + self.mel_t.size * 2
                          + B * n_frames_pad * m_pad * 4)

        tf_over_rw = tf // rw   # exact: tf is a multiple of 16, rw of 8

        out = pl.pallas_call(
            kernel,
            out_shape=jax.ShapeDtypeStruct((B, n_frames_pad, m_pad), jnp.float32),
            grid_spec=pltpu.PrefetchScalarGridSpec(
                num_scalar_prefetch=0,
                grid=(B, n_tiles),
                in_specs=[
                    # main window: rows [f*tf, f*tf + tf) of batch b (auto double-buffered)
                    pl.BlockSpec((None, tf, hop), lambda b, f: (b, f, 0)),
                    # tail window: rows [ (f+1)*tf, (f+1)*tf + rw ) -> frame overlap into next tile
                    pl.BlockSpec((None, rw, hop), lambda b, f: (b, (f + 1) * tf_over_rw, 0)),
                    # windowed DFT basis [cos | -sin], bf16, resident (constant index map)
                    pl.BlockSpec((n_fft, 2 * f_pad), lambda b, f: (0, 0)),
                    # mel_basis^T (lane-padded), bf16, resident
                    pl.BlockSpec((f_pad, m_pad), lambda b, f: (0, 0)),
                ],
                out_specs=pl.BlockSpec((None, tf, m_pad), lambda b, f: (b, f, 0)),
            ),
            compiler_params=pltpu.CompilerParams(
                dimension_semantics=("parallel", "parallel"),
                vmem_limit_bytes=48 * 1024 * 1024,
            ),
            cost_estimate=pl.CostEstimate(
                flops=int(flops),
                transcendentals=int(transcendentals),
                bytes_accessed=int(bytes_accessed),
            ),
        )(rows, rows, self.basis, self.mel_t)

        # Drop frame/mel padding, return PyTorch layout (B, n_mel, n_frames).
        out = out[:, :n_frames, :self.n_mel_channels]
        return jnp.transpose(out, (0, 2, 1))


# ----------------------------------------------------------------------------
# Pure-JAX reference (rfft) for a correctness sanity check.
# ----------------------------------------------------------------------------
def reference_audio2mel(audio, window_1d, mel_basis, n_fft, hop):
    p = (n_fft - hop) // 2
    a = jnp.pad(audio, ((0, 0), (0, 0), (p, p)), mode="reflect")[:, 0, :]
    Tp = a.shape[-1]
    n_frames = 1 + (Tp - n_fft) // hop
    starts = jnp.arange(n_frames) * hop
    idx = starts[:, None] + jnp.arange(n_fft)[None, :]
    frames = a[:, idx] * window_1d[None, None, :]
    spec = jnp.fft.rfft(frames, axis=-1)
    mag = jnp.abs(spec)                                   # (B, n_frames, n_freq)
    mel = jnp.einsum("mf,bnf->bmn", mel_basis, mag)       # (B, n_mel, n_frames)
    return jnp.log10(jnp.maximum(mel, 1e-5))


if __name__ == "__main__":
    # Small config consistent with the module (scaled-down STFT, hop kept lane-aligned).
    n_fft, hop, win = 512, 128, 512
    sr, n_mel = 16000, 80
    B, T = 2, 4096

    key = jax.random.PRNGKey(0)
    audio = jax.random.normal(key, (B, 1, T), dtype=jnp.float32)

    model = Audio2Mel(n_fft=n_fft, hop_length=hop, win_length=win,
                      sampling_rate=sr, n_mel_channels=n_mel)

    log_mel = jax.block_until_ready(model(audio))

    # Sanity check against an rfft-based pure-JAX f32 reference.  The kernel uses bf16 MXU
    # operands (frames, DFT basis, magnitudes, mel table) with f32 accumulation, so allow a
    # looser-than-f32 tolerance on the log-mel values.
    ref = jax.block_until_ready(
        reference_audio2mel(audio, model.window, model.mel_basis, n_fft, hop))
    assert log_mel.shape == ref.shape, (log_mel.shape, ref.shape)
    np.testing.assert_allclose(np.asarray(log_mel), np.asarray(ref), rtol=5e-2, atol=5e-2)

    print("KERNEL_OK")
</pallas_src>

<mosaic_0001>
module attributes {stable_mosaic.version = 11 : i64} {
  func.func @audio2mel_kernel(%arg0: i32, %arg1: i32, %arg2: memref<1x32x128xf32, #tpu.memory_space<vmem>>, %arg3: memref<1x8x128xf32, #tpu.memory_space<vmem>>, %arg4: memref<512x768xbf16, #tpu.memory_space<vmem>>, %arg5: memref<384x128xbf16, #tpu.memory_space<vmem>>, %arg6: memref<1x32x128xf32, #tpu.memory_space<vmem>>) attributes {dimension_semantics = [#tpu.dimension_semantics<parallel>, #tpu.dimension_semantics<parallel>], iteration_bounds = array<i64: 2, 1>, scalar_prefetch = 0 : i64, scratch_operands = 0 : i64, tpu.core_type = #tpu.core_type<tc>, window_params = [{transform_indices = @transform_0, window_bounds = array<i64: 1, 32, 128>}, {transform_indices = @transform_1, window_bounds = array<i64: 1, 8, 128>}, {pipeline_mode = #tpu.pipeline_mode<synchronous>, transform_indices = @transform_2, window_bounds = array<i64: 512, 768>}, {pipeline_mode = #tpu.pipeline_mode<synchronous>, transform_indices = @transform_3, window_bounds = array<i64: 384, 128>}, {transform_indices = @transform_4, window_bounds = array<i64: 1, 32, 128>}]} {
    %c0 = arith.constant 0 : index
    %c0_0 = arith.constant 0 : index
    %c0_1 = arith.constant 0 : index
    %0 = vector.load %arg2[%c0, %c0_0, %c0_1] : memref<1x32x128xf32, #tpu.memory_space<vmem>>, vector<1x32x128xf32>
    %1 = vector.shape_cast %0 : vector<1x32x128xf32> to vector<32x128xf32>
    %c0_2 = arith.constant 0 : index
    %c0_3 = arith.constant 0 : index
    %c0_4 = arith.constant 0 : index
    %2 = vector.load %arg3[%c0_2, %c0_3, %c0_4] : memref<1x8x128xf32, #tpu.memory_space<vmem>>, vector<1x8x128xf32>
    %3 = vector.shape_cast %2 : vector<1x8x128xf32> to vector<8x128xf32>
    %4 = tpu.concatenate %1, %3 in 0 : vector<32x128xf32>, vector<8x128xf32> -> vector<40x128xf32>
    %5 = vector.extract_strided_slice %4 {offsets = [0, 0], sizes = [32, 128], strides = [1, 1]} : vector<40x128xf32> to vector<32x128xf32>
    %6 = vector.extract_strided_slice %4 {offsets = [1, 0], sizes = [32, 128], strides = [1, 1]} : vector<40x128xf32> to vector<32x128xf32>
    %7 = vector.extract_strided_slice %4 {offsets = [2, 0], sizes = [32, 128], strides = [1, 1]} : vector<40x128xf32> to vector<32x128xf32>
    %8 = vector.extract_strided_slice %4 {offsets = [3, 0], sizes = [32, 128], strides = [1, 1]} : vector<40x128xf32> to vector<32x128xf32>
    %9 = tpu.concatenate %5, %6, %7, %8 in 1 : vector<32x128xf32>, vector<32x128xf32>, vector<32x128xf32>, vector<32x128xf32> -> vector<32x512xf32>
    %10 = arith.truncf %9 : vector<32x512xf32> to vector<32x512xbf16>
    %c0_5 = arith.constant 0 : index
    %c0_6 = arith.constant 0 : index
    %11 = vector.load %arg4[%c0_5, %c0_6] : memref<512x768xbf16, #tpu.memory_space<vmem>>, vector<512x768xbf16>
    %cst = arith.constant dense<0.000000e+00> : vector<32x768xf32>
    %12 = tpu.matmul %10, %11, %cst {dimension_numbers = #tpu.dot_dimension_numbers<[1], [0], [0], [1], [0, 0, 1, 1], [], []>} : vector<32x512xbf16>, vector<512x768xbf16>, vector<32x768xf32> -> vector<32x768xf32>
    %13 = vector.extract_strided_slice %12 {offsets = [0, 0], sizes = [32, 384], strides = [1, 1]} : vector<32x768xf32> to vector<32x384xf32>
    %14 = vector.extract_strided_slice %12 {offsets = [0, 384], sizes = [32, 384], strides = [1, 1]} : vector<32x768xf32> to vector<32x384xf32>
    %15 = arith.mulf %13, %13 : vector<32x384xf32>
    %16 = arith.mulf %14, %14 : vector<32x384xf32>
    %17 = arith.addf %15, %16 : vector<32x384xf32>
    %18 = math.sqrt %17 : vector<32x384xf32>
    %19 = arith.truncf %18 : vector<32x384xf32> to vector<32x384xbf16>
    %c0_7 = arith.constant 0 : index
    %c0_8 = arith.constant 0 : index
    %20 = vector.load %arg5[%c0_7, %c0_8] : memref<384x128xbf16, #tpu.memory_space<vmem>>, vector<384x128xbf16>
    %cst_9 = arith.constant dense<0.000000e+00> : vector<32x128xf32>
    %21 = tpu.matmul %19, %20, %cst_9 {dimension_numbers = #tpu.dot_dimension_numbers<[1], [0], [0], [1], [0, 0, 1, 1], [], []>} : vector<32x384xbf16>, vector<384x128xbf16>, vector<32x128xf32> -> vector<32x128xf32>
    %cst_10 = arith.constant 9.99999974E-6 : f32
    %22 = vector.broadcast %cst_10 : f32 to vector<32x128xf32>
    %23 = arith.maximumf %21, %22 : vector<32x128xf32>
    %24 = math.log %23 : vector<32x128xf32>
    %cst_11 = arith.constant 0.434294492 : f32
    %25 = vector.broadcast %cst_11 : f32 to vector<32x128xf32>
    %26 = arith.mulf %24, %25 : vector<32x128xf32>
    %c0_12 = arith.constant 0 : index
    %c0_13 = arith.constant 0 : index
    %c0_14 = arith.constant 0 : index
    %27 = vector.load %arg6[%c0_12, %c0_13, %c0_14] : memref<1x32x128xf32, #tpu.memory_space<vmem>>, vector<1x32x128xf32>
    %28 = vector.shape_cast %27 : vector<1x32x128xf32> to vector<32x128xf32>
    %29 = vector.shape_cast %26 : vector<32x128xf32> to vector<1x32x128xf32>
    tpu.vector_store %arg6[%c0_12, %c0_13, %c0_14], %29 {strides = array<i32>} : memref<1x32x128xf32, #tpu.memory_space<vmem>>, vector<1x32x128xf32>,
    return
  }
  func.func @transform_0(%arg0: i32, %arg1: i32) -> (i32, i32, i32) {
    %c0_i32 = arith.constant 0 : i32
    %c0_i32_0 = arith.constant 0 : i32
    return %arg0, %arg1, %c0_i32 : i32, i32, i32
  }
  func.func @transform_1(%arg0: i32, %arg1: i32) -> (i32, i32, i32) {
    %c1_i32 = arith.constant 1 : i32
    %0 = arith.addi %arg1, %c1_i32 : i32
    %c4_i32 = arith.constant 4 : i32
    %1 = arith.muli %0, %c4_i32 : i32
    %c0_i32 = arith.constant 0 : i32
    %c0_i32_0 = arith.constant 0 : i32
    return %arg0, %1, %c0_i32 : i32, i32, i32
  }
  func.func @transform_2(%arg0: i32, %arg1: i32) -> (i32, i32) {
    %c0_i32 = arith.constant 0 : i32
    %c0_i32_0 = arith.constant 0 : i32
    %c0_i32_1 = arith.constant 0 : i32
    return %c0_i32, %c0_i32_0 : i32, i32
  }
  func.func @transform_3(%arg0: i32, %arg1: i32) -> (i32, i32) {
    %c0_i32 = arith.constant 0 : i32
    %c0_i32_0 = arith.constant 0 : i32
    %c0_i32_1 = arith.constant 0 : i32
    return %c0_i32, %c0_i32_0 : i32, i32
  }
  func.func @transform_4(%arg0: i32, %arg1: i32) -> (i32, i32, i32) {
    %c0_i32 = arith.constant 0 : i32
    %c0_i32_0 = arith.constant 0 : i32
    return %arg0, %arg1, %c0_i32 : i32, i32, i32
  }
}

</mosaic_0001>

<llo_original>
// kernel: tpu_custom_call.1
$region0: #{tpu_custom_call.1}
  #allocation0 [shape = 'u32[]', space=smem, size = 0x4, offset = 0x4, fixed_abs, tag = 'smem constant byte address 0x4 - core index']
  #allocation1 [shape = 'u32[144,128]{1,0:T(1,128)}', space=vmem, size = 0x12000, scoped, tag = 'internal scratch']
  %s0 = inlined_call_operand.hbm [shape: f32[2,40,128], index: 0, kind: input, shape index: {}]
  %s1 = inlined_call_operand.hbm [shape: f32[2,40,128], index: 1, kind: input, shape index: {}]
  %s2 = inlined_call_operand.hbm [shape: bf16[512,768], index: 2, kind: input, shape index: {}]
  %s3 = inlined_call_operand.hbm [shape: bf16[384,128], index: 3, kind: input, shape index: {}]
  %s4 = inlined_call_operand.hbm [shape: f32[2,32,128], index: 4, kind: output, shape index: {}]
  %s5 = sld [smem:[#allocation0]]
  $region65: #{tpu_custom_call.1} parent=0
    _
  %s7 = ssub.s32 1, %s5
  %s8 = scalar_select 0, %s7, %s5
  $region1: #{tpu_custom_call.1} parent=0
    #allocation2 [shape = 'u8[32768]{0}', space=vmem, size = 0x8000, scoped, tag = 'input window, operand 0']
    #allocation3 [shape = 's32[2]{0}', space=sflag, size = 0x8, scoped, tag = 'scoped memory for tpu_custom_call.1']
    #allocation4 [shape = 's32[2]{0}', space=sflag, size = 0x8, scoped, tag = 'scoped memory for tpu_custom_call.1']
    #allocation5 [shape = 'u8[8192]{0}', space=vmem, size = 0x2000, scoped, tag = 'input window, operand 1']
    #allocation6 [shape = 's32[2]{0}', space=sflag, size = 0x8, scoped, tag = 'scoped memory for tpu_custom_call.1']
    #allocation7 [shape = 'u8[786432]{0}', space=vmem, size = 0xc0000, scoped, tag = 'input window, operand 2, single buffered']
    #allocation8 [shape = 'u8[98304]{0}', space=vmem, size = 0x18000, scoped, tag = 'input window, operand 3, single buffered']
    #allocation9 [shape = 's32[1]{0}', space=sflag, size = 0x4, scoped, tag = 'scoped memory for tpu_custom_call.1']
    #allocation10 [shape = 'u8[32768]{0}', space=vmem, size = 0x8000, scoped, tag = 'output window, operand 0']
    %9 = vsyncpa [#allocation3], 0
    %s10 = scalar_lea.sflag [#allocation3], 1
    %11 = vsyncpa %s10, 0
    %12 = vsyncpa [#allocation6], 0
    %s13 = scalar_lea.sflag [#allocation6], 1
    %14 = vsyncpa %s13, 0
    %15 = vsyncpa [#allocation9], 0
    %16 = vsyncpa [#allocation4], 0
    %s17 = scalar_lea.sflag [#allocation4], 1
    %18 = vsyncpa %s17, 0
    loop: start=0, step=1, limit=4
    $region2: #{tpu_custom_call.1} parent=1 // loop_pre_header
      _
    $region3: #{tpu_custom_call.1} parent=1 // loop_header
      %s20 = sphi 0, %s24
      %p21 = scmp.ge.s32.totalorder %s20, 4
      %s27 = sphi 0, %s39
      %s28 = sphi 0, %s35
      %s29 = sphi 0, %s27
      %s30 = sphi 0, %s28
      %s31 = sphi 0, %s29
      %s32 = sphi 0, %s30
      %s44 = sphi 0, %s46
      %s47 = sphi 0, %s44
      %s48 = sphi 0, %s47
      %s64 = sphi 0, %s48
      %s76 = sphi 0, %s78
      %s79 = sphi 0, %s76
      %s80 = sphi 0, %s79
      %s96 = sphi 0, %s80
      %s100 = sphi 0, %s100
      %s102 = sphi 0, %s100
      %s103 = sphi 0, %s102
      %s117 = sphi 0, %s103
      %s121 = sphi 0, %s121
      %s123 = sphi 0, %s121
      %s124 = sphi 0, %s123
      %s138 = sphi 0, %s124
      %s146 = sphi 0, %s148
      %s149 = sphi 0, %s146
      %s150 = sphi 0, %s149
      %s166 = sphi 0, %s150
    $region4: #{tpu_custom_call.1} parent=1 // loop_header_branch
      %23 = sbr.rel (%p21) target = $region8
    $region5: #{tpu_custom_call.1} parent=1 // loop_body
      %s25 = ssub.s32 %s20, 1
      %s26 = ssub.s32 %s20, 2
      %s33 = sadd.s32 1, %s28
      %p34 = scmp.ge.s32.totalorder %s33, 1
      %s35 = scalar_select %p34, 0, %s33
      %s36 = sadd.s32 1, %s27
      %s37 = scalar_select %p34, %s36, %s27
      %p38 = scmp.ge.s32.totalorder %s37, 2
      %s39 = scalar_select %p38, 0, %s37
      %s40 = ssub.s32 %s27, %s39
      %s41 = ssub.s32 %s28, %s35
      %s42 = sor.u32 %s40, %s41
      %p43 = scmp.eq.s32.totalorder %s42, 0
      %s45 = sadd.s32 %s44, 1
      %s46 = scalar_select %p43, %s44, %s45
      %p49 = pneg %p43
      %p50 = scmp.eq.s32.totalorder %s20, 1
      %p51 = por %p49, %p50
      %p52 = scmp.ne.s32.totalorder %s44, %s47
      %p53 = scmp.eq.s32.totalorder %s20, 0
      %p54 = por %p52, %p53
      %p55 = scmp.ne.s32.totalorder %s44, %s47
      %p56 = scmp.eq.s32.totalorder %s25, 1
      %p57 = por %p55, %p56
      %p58 = scmp.ne.s32.totalorder %s47, %s48
      %p59 = scmp.eq.s32.totalorder %s25, 0
      %p60 = por %p58, %p59
      %p61 = scmp.ne.s32.totalorder %s47, %s48
      %p62 = scmp.eq.s32.totalorder %s26, 1
      %p63 = por %p61, %p62
      %p65 = scmp.ne.s32.totalorder %s48, %s64
      %p66 = scmp.eq.s32.totalorder %s26, 0
      %p67 = por %p65, %p66
      %s68 = sadd.s32 %s28, 1
      %s69 = smul.u32 %s68, 4
      %s70 = sadd.s32 %s35, 1
      %s71 = smul.u32 %s70, 4
      %s72 = ssub.s32 %s27, %s39
      %s73 = ssub.s32 %s69, %s71
      %s74 = sor.u32 %s72, %s73
      %p75 = scmp.eq.s32.totalorder %s74, 0
      %s77 = sadd.s32 %s76, 1
      %s78 = scalar_select %p75, %s76, %s77
      %p81 = pneg %p75
      %p82 = scmp.eq.s32.totalorder %s20, 1
      %p83 = por %p81, %p82
      %p84 = scmp.ne.s32.totalorder %s76, %s79
      %p85 = scmp.eq.s32.totalorder %s20, 0
      %p86 = por %p84, %p85
      %p87 = scmp.ne.s32.totalorder %s76, %s79
      %p88 = scmp.eq.s32.totalorder %s25, 1
      %p89 = por %p87, %p88
      %p90 = scmp.ne.s32.totalorder %s79, %s80
      %p91 = scmp.eq.s32.totalorder %s25, 0
      %p92 = por %p90, %p91
      %p93 = scmp.ne.s32.totalorder %s79, %s80
      %p94 = scmp.eq.s32.totalorder %s26, 1
      %p95 = por %p93, %p94
      %p97 = scmp.ne.s32.totalorder %s80, %s96
      %p98 = scmp.eq.s32.totalorder %s26, 0
      %p99 = por %p97, %p98
      %s101 = sadd.s32 %s100, 1
      %p104 = scmp.eq.s32.totalorder %s20, 1
      %p105 = scmp.ne.s32.totalorder %s100, %s102
      %p106 = scmp.eq.s32.totalorder %s20, 0
      %p107 = por %p105, %p106
      %p108 = scmp.ne.s32.totalorder %s100, %s102
      %p109 = scmp.eq.s32.totalorder %s25, 1
      %p110 = por %p108, %p109
      %p111 = scmp.ne.s32.totalorder %s102, %s103
      %p112 = scmp.eq.s32.totalorder %s25, 0
      %p113 = por %p111, %p112
      %p114 = scmp.ne.s32.totalorder %s102, %s103
      %p115 = scmp.eq.s32.totalorder %s26, 1
      %p116 = por %p114, %p115
      %p118 = scmp.ne.s32.totalorder %s103, %s117
      %p119 = scmp.eq.s32.totalorder %s26, 0
      %p120 = por %p118, %p119
      %s122 = sadd.s32 %s121, 1
      %p125 = scmp.eq.s32.totalorder %s20, 1
      %p126 = scmp.ne.s32.totalorder %s121, %s123
      %p127 = scmp.eq.s32.totalorder %s20, 0
      %p128 = por %p126, %p127
      %p129 = scmp.ne.s32.totalorder %s121, %s123
      %p130 = scmp.eq.s32.totalorder %s25, 1
      %p131 = por %p129, %p130
      %p132 = scmp.ne.s32.totalorder %s123, %s124
      %p133 = scmp.eq.s32.totalorder %s25, 0
      %p134 = por %p132, %p133
      %p135 = scmp.ne.s32.totalorder %s123, %s124
      %p136 = scmp.eq.s32.totalorder %s26, 1
      %p137 = por %p135, %p136
      %p139 = scmp.ne.s32.totalorder %s124, %s138
      %p140 = scmp.eq.s32.totalorder %s26, 0
      %p141 = por %p139, %p140
      %s142 = ssub.s32 %s27, %s39
      %s143 = ssub.s32 %s28, %s35
      %s144 = sor.u32 %s142, %s143
      %p145 = scmp.eq.s32.totalorder %s144, 0
      %s147 = sadd.s32 %s146, 1
      %s148 = scalar_select %p145, %s146, %s147
      %p151 = pneg %p145
      %p152 = scmp.eq.s32.totalorder %s20, 1
      %p153 = por %p151, %p152
      %p154 = scmp.ne.s32.totalorder %s146, %s149
      %p155 = scmp.eq.s32.totalorder %s20, 0
      %p156 = por %p154, %p155
      %p157 = scmp.ne.s32.totalorder %s146, %s149
      %p158 = scmp.eq.s32.totalorder %s25, 1
      %p159 = por %p157, %p158
      %p160 = scmp.ne.s32.totalorder %s149, %s150
      %p161 = scmp.eq.s32.totalorder %s25, 0
      %p162 = por %p160, %p161
      %p163 = scmp.ne.s32.totalorder %s149, %s150
      %p164 = scmp.eq.s32.totalorder %s26, 1
      %p165 = por %p163, %p164
      %p167 = scmp.ne.s32.totalorder %s150, %s166
      %p168 = scmp.eq.s32.totalorder %s26, 0
      %p169 = por %p167, %p168
      %p170 = scmp.le.s32.totalorder 1, %s20
      %p171 = scmp.lt.s32.totalorder %s20, 3
      %p172 = pnand %p170, %p171
      %p173 = pneg %p172
      // Predicated region
      $region9: #{tpu_custom_call.1} parent=5 // pred_check
        _
      $region10: #{tpu_custom_call.1} parent=5 // pred_check_branch
        %175 = sbr.rel (%p172) target = $region12
      $region11: #{tpu_custom_call.1} parent=5 // pred_region
        %s176 = ssub.s32 %s20, 1
        // Predicated region
        $region13: #{tpu_custom_call.1} parent=11 // pred_check
          %p177 = pneg %p113
        $region14: #{tpu_custom_call.1} parent=11 // pred_check_branch
          %179 = sbr.rel (%p177) target = $region16
        $region15: #{tpu_custom_call.1} parent=11 // pred_region
          %s181 = ssub.s32 24576, 24576
          %182 = vsyncadd [#allocation6], %s181
          %s183 = sshll.u32 [#allocation7], 4
          %s184 = int_to_ptr.vmem [resolvable:$true] %s183
          %189 = dma.hbm_to_vmem [thread:$0]  %s2, 24576, %s184, [#allocation6], 384, 384, 24
        $region16: #{tpu_custom_call.1} parent=11 // pred_fallthru
          _
        // Predicated region
        $region17: #{tpu_custom_call.1} parent=11 // pred_check
          %p190 = pneg %p134
        $region18: #{tpu_custom_call.1} parent=11 // pred_check_branch
          %192 = sbr.rel (%p190) target = $region20
        $region19: #{tpu_custom_call.1} parent=11 // pred_region
          %s194 = ssub.s32 3072, 3072
          %195 = vsyncadd [#allocation9], %s194
          %s196 = sshll.u32 [#allocation8], 4
          %s197 = int_to_ptr.vmem [resolvable:$true] %s196
          %202 = dma.hbm_to_vmem [thread:$0]  %s3, 3072, %s197, [#allocation9], 64, 64, 4
        $region20: #{tpu_custom_call.1} parent=11 // pred_fallthru
          _
      $region12: #{tpu_custom_call.1} parent=5 // pred_fallthru
        _
      %p203 = scmp.lt.s32.totalorder %s20, 2
      // Predicated region
      $region21: #{tpu_custom_call.1} parent=5 // pred_check
        %p204 = pneg %p203
      $region22: #{tpu_custom_call.1} parent=5 // pred_check_branch
        %206 = sbr.rel (%p204) target = $region24
      $region23: #{tpu_custom_call.1} parent=5 // pred_region
        // Predicated region
        $region25: #{tpu_custom_call.1} parent=23 // pred_check
          %p207 = pneg %p54
        $region26: #{tpu_custom_call.1} parent=23 // pred_check_branch
          %209 = sbr.rel (%p207) target = $region28
        $region27: #{tpu_custom_call.1} parent=23 // pred_region
          %s210 = sand.u32 %s44, 1
          %s211 = scalar_lea.sflag [#allocation3], %s210
          %s212 = sand.u32 %s44, 1
          %s213 = smul.addr %s212, 32
          %s214 = scalar_lea.vmem [#allocation2], %s213
          %s215 = smul.u32 4, %s28
          %s216 = ssub.s32 5, %s215
          %p217 = scmp.lt.s32.totalorder %s216, 4
          %s218 = scalar_select %p217, %s216, 4
          %s219 = smul.u32 128, %s218
          %s221 = ssub.s32 512, %s219
          %222 = vsyncadd %s211, %s221
          %p223 = scmp.ne.s32.totalorder 0, %s219
          %s224 = smul.addr %s27, 5
          %s225 = sadd.s32 %s215, %s224
          %s226 = smul.addr %s225, 128
          %s227 = scalar_lea.hbm %s0, %s226
          %s228 = smul.u32 8, %s218
          %s229 = sshll.u32 %s214, 4
          %s230 = int_to_ptr.vmem [resolvable:$true] %s229
          %s231 = sshll.u32 %s228, 4
          %235 = dma.hbm_to_vmem [thread:$0]  (%p223), %s227, %s231, %s230, %s211, 128, 128, 8
        $region28: #{tpu_custom_call.1} parent=23 // pred_fallthru
          _
        // Predicated region
        $region29: #{tpu_custom_call.1} parent=23 // pred_check
          %p236 = pneg %p86
        $region30: #{tpu_custom_call.1} parent=23 // pred_check_branch
          %238 = sbr.rel (%p236) target = $region32
        $region31: #{tpu_custom_call.1} parent=23 // pred_region
          %s239 = sand.u32 %s20, 1
          %s240 = scalar_lea.sflag [#allocation6], %s239
          %s241 = sand.u32 %s76, 1
          %s242 = smul.addr %s241, 8
          %s243 = scalar_lea.vmem [#allocation5], %s242
          %s244 = sadd.s32 %s28, 1
          %s245 = smul.u32 %s244, 4
          %s247 = ssub.s32 128, 128
          %248 = vsyncadd %s240, %s247
          %s249 = smul.addr %s27, 5
          %s250 = sadd.s32 %s245, %s249
          %s251 = smul.addr %s250, 128
          %s252 = scalar_lea.hbm %s1, %s251
          %s254 = sshll.u32 %s243, 4
          %s255 = int_to_ptr.vmem [resolvable:$true] %s254
          %257 = dma.hbm_to_vmem [thread:$0]  %s252, 128, %s255, %s240
        $region32: #{tpu_custom_call.1} parent=23 // pred_fallthru
          _
      $region24: #{tpu_custom_call.1} parent=5 // pred_fallthru
        _
      %p258 = scmp.le.s32.totalorder 1, %s20
      %p259 = scmp.lt.s32.totalorder %s20, 3
      %p260 = pnand %p258, %p259
      %p261 = pneg %p260
      // Predicated region
      $region33: #{tpu_custom_call.1} parent=5 // pred_check
        _
      $region34: #{tpu_custom_call.1} parent=5 // pred_check_branch
        %263 = sbr.rel (%p260) target = $region36
      $region35: #{tpu_custom_call.1} parent=5 // pred_region
        %s264 = ssub.s32 %s20, 1
        %s265 = sand.u32 %s47, 1
        %s266 = scalar_lea.sflag [#allocation3], %s265
        %s267 = sand.u32 %s47, 1
        %s268 = smul.addr %s267, 32
        %s269 = scalar_lea.vmem [#allocation2], %s268
        // Predicated region
        $region37: #{tpu_custom_call.1} parent=35 // pred_check
          %p270 = pneg %p60
        $region38: #{tpu_custom_call.1} parent=35 // pred_check_branch
          %272 = sbr.rel (%p270) target = $region40
        $region39: #{tpu_custom_call.1} parent=35 // pred_region
          %273 = dma.done %s266, 512
        $region40: #{tpu_custom_call.1} parent=35 // pred_fallthru
          _
        %s274 = sand.u32 %s25, 1
        %s275 = scalar_lea.sflag [#allocation6], %s274
        %s276 = sand.u32 %s79, 1
        %s277 = smul.addr %s276, 8
        %s278 = scalar_lea.vmem [#allocation5], %s277
        // Predicated region
        $region41: #{tpu_custom_call.1} parent=35 // pred_check
          %p279 = pneg %p92
        $region42: #{tpu_custom_call.1} parent=35 // pred_check_branch
          %281 = sbr.rel (%p279) target = $region44
        $region43: #{tpu_custom_call.1} parent=35 // pred_region
          %282 = dma.done %s275, 128
        $region44: #{tpu_custom_call.1} parent=35 // pred_fallthru
          _
        // Predicated region
        $region45: #{tpu_custom_call.1} parent=35 // pred_check
          %p283 = pneg %p113
        $region46: #{tpu_custom_call.1} parent=35 // pred_check_branch
          %285 = sbr.rel (%p283) target = $region48
        $region47: #{tpu_custom_call.1} parent=35 // pred_region
          %286 = dma.done [#allocation6], 24576
        $region48: #{tpu_custom_call.1} parent=35 // pred_fallthru
          _
        // Predicated region
        $region49: #{tpu_custom_call.1} parent=35 // pred_check
          %p287 = pneg %p134
        $region50: #{tpu_custom_call.1} parent=35 // pred_check_branch
          %289 = sbr.rel (%p287) target = $region52
        $region51: #{tpu_custom_call.1} parent=35 // pred_region
          %290 = dma.done [#allocation9], 3072
        $region52: #{tpu_custom_call.1} parent=35 // pred_fallthru
          _
        %s291 = sand.u32 %s47, 1
        %s292 = scalar_lea.sflag [#allocation3], %s291
        %s293 = sand.u32 %s47, 1
        %s294 = smul.addr %s293, 32
        %s295 = scalar_lea.vmem [#allocation2], %s294
        %p296 = pneg %p60
        %p297 = pneg %p57
        %s298 = sand.u32 %s25, 1
        %s299 = scalar_lea.sflag [#allocation6], %s298
        %s300 = sand.u32 %s79, 1
        %s301 = smul.addr %s300, 8
        %s302 = scalar_lea.vmem [#allocation5], %s301
        %p303 = pneg %p92
        %p304 = pneg %p89
        %p305 = pneg %p113
        %p306 = pneg %p110
        %p307 = pneg %p134
        %p308 = pneg %p131
        %p309 = pneg %p162
        %p310 = pneg %p159
        %s311 = sand.u32 %s149, 1
        %s312 = scalar_lea.sflag [#allocation4], %s311
        %s313 = sand.u32 %s149, 1
        %s314 = smul.addr %s313, 32
        %s315 = scalar_lea.vmem [#allocation10], %s314
        %s316 = smul.u32 4, %s30
        %s317 = ssub.s32 5, %s316
        %p318 = scmp.lt.s32.totalorder %s317, 4
        %s319 = scalar_select %p318, %s317, 4
        %s320 = smul.u32 128, %s319
        %s321 = sadd.s32 %s30, 1
        %s322 = smul.u32 %s321, 4
        %s323 = smul.u32 4, %s30
        %v325 = vld [vmem:[%s269] sm:$0xff]
        %v326 = vld [vmem:[%s269 + $0x8] sm:$0xff]
        %v327 = vld [vmem:[%s269 + $0x10] sm:$0xff]
        %v328 = vld [vmem:[%s269 + $0x18] sm:$0xff]
        %v329 = vld [vmem:[%s278] sm:$0xff]
        %vm335 = vcmask 1046528
        %v336 = vrot.slane %v325, 1
        %v337 = vrot.slane %v326, 1
        %v338 = vsel %vm335, %v336, %v337
        %v339 = vrot.slane %v327, 1
        %v340 = vsel %vm335, %v337, %v339
        %v341 = vrot.slane %v328, 1
        %v342 = vsel %vm335, %v339, %v341
        %v343 = vrot.slane %v329, 1
        %v344 = vsel %vm335, %v341, %v343
        %vm349 = vcmask 1045504
        %v350 = vrot.slane %v325, 2
        %v351 = vrot.slane %v326, 2
        %v352 = vsel %vm349, %v350, %v351
        %v353 = vrot.slane %v327, 2
        %v354 = vsel %vm349, %v351, %v353
        %v355 = vrot.slane %v328, 2
        %v356 = vsel %vm349, %v353, %v355
        %v357 = vrot.slane %v329, 2
        %v358 = vsel %vm349, %v355, %v357
        %vm363 = vcmask 1044480
        %v364 = vrot.slane %v325, 3
        %v365 = vrot.slane %v326, 3
        %v366 = vsel %vm363, %v364, %v365
        %v367 = vrot.slane %v327, 3
        %v368 = vsel %vm363, %v365, %v367
        %v369 = vrot.slane %v328, 3
        %v370 = vsel %vm363, %v367, %v369
        %v371 = vrot.slane %v329, 3
        %v372 = vsel %vm363, %v369, %v371
        %v377 = vpack.c.bf16 %v326, %v325
        %v378 = vpack.c.bf16 %v340, %v338
        %v379 = vpack.c.bf16 %v354, %v352
        %v380 = vpack.c.bf16 %v368, %v366
        %v381 = vpack.c.bf16 %v328, %v327
        %v382 = vpack.c.bf16 %v344, %v342
        %v383 = vpack.c.bf16 %v358, %v356
        %v384 = vpack.c.bf16 %v372, %v370
        %v385 = vld [vmem:[#allocation7] sm:$0xff]
        %v386 = vld [vmem:[#allocation7 + $0x8] sm:$0xff]
        %v387 = vld [vmem:[#allocation7 + $0x10] sm:$0xff]
        %v388 = vld [vmem:[#allocation7 + $0x18] sm:$0xff]
        %v389 = vld [vmem:[#allocation7 + $0x20] sm:$0xff]
        %v390 = vld [vmem:[#allocation7 + $0x28] sm:$0xff]
        %v391 = vld [vmem:[#allocation7 + $0x30] sm:$0xff]
        %v392 = vld [vmem:[#allocation7 + $0x38] sm:$0xff]
        %v393 = vld [vmem:[#allocation7 + $0x40] sm:$0xff]
        %v394 = vld [vmem:[#allocation7 + $0x48] sm:$0xff]
        %v395 = vld [vmem:[#allocation7 + $0x50] sm:$0xff]
        %v396 = vld [vmem:[#allocation7 + $0x58] sm:$0xff]
        %v397 = vld [vmem:[#allocation7 + $0x60] sm:$0xff]
        %v398 = vld [vmem:[#allocation7 + $0x68] sm:$0xff]
        %v399 = vld [vmem:[#allocation7 + $0x70] sm:$0xff]
        %v400 = vld [vmem:[#allocation7 + $0x78] sm:$0xff]
        %v401 = vld [vmem:[#allocation7 + $0x80] sm:$0xff]
        %v402 = vld [vmem:[#allocation7 + $0x88] sm:$0xff]
        %v403 = vld [vmem:[#allocation7 + $0x90] sm:$0xff]
        %v404 = vld [vmem:[#allocation7 + $0x98] sm:$0xff]
        %v405 = vld [vmem:[#allocation7 + $0xa0] sm:$0xff]
        %v406 = vld [vmem:[#allocation7 + $0xa8] sm:$0xff]
        %v407 = vld [vmem:[#allocation7 + $0xb0] sm:$0xff]
        %v408 = vld [vmem:[#allocation7 + $0xb8] sm:$0xff]
        %v409 = vld [vmem:[#allocation7 + $0xc0] sm:$0xff]
        %v410 = vld [vmem:[#allocation7 + $0xc8] sm:$0xff]
        %v411 = vld [vmem:[#allocation7 + $0xd0] sm:$0xff]
        %v412 = vld [vmem:[#allocation7 + $0xd8] sm:$0xff]
        %v413 = vld [vmem:[#allocation7 + $0xe0] sm:$0xff]
        %v414 = vld [vmem:[#allocation7 + $0xe8] sm:$0xff]
        %v415 = vld [vmem:[#allocation7 + $0xf0] sm:$0xff]
        %v416 = vld [vmem:[#allocation7 + $0xf8] sm:$0xff]
        %v417 = vld [vmem:[#allocation7 + $0x100] sm:$0xff]
        %v418 = vld [vmem:[#allocation7 + $0x108] sm:$0xff]
        %v419 = vld [vmem:[#allocation7 + $0x110] sm:$0xff]
        %v420 = vld [vmem:[#allocation7 + $0x118] sm:$0xff]
        %v421 = vld [vmem:[#allocation7 + $0x120] sm:$0xff]
        %v422 = vld [vmem:[#allocation7 + $0x128] sm:$0xff]
        %v423 = vld [vmem:[#allocation7 + $0x130] sm:$0xff]
        %v424 = vld [vmem:[#allocation7 + $0x138] sm:$0xff]
        %v425 = vld [vmem:[#allocation7 + $0x140] sm:$0xff]
        %v426 = vld [vmem:[#allocation7 + $0x148] sm:$0xff]
        %v427 = vld [vmem:[#allocation7 + $0x150] sm:$0xff]
        %v428 = vld [vmem:[#allocation7 + $0x158] sm:$0xff]
        %v429 = vld [vmem:[#allocation7 + $0x160] sm:$0xff]
        %v430 = vld [vmem:[#allocation7 + $0x168] sm:$0xff]
        %v431 = vld [vmem:[#allocation7 + $0x170] sm:$0xff]
        %v432 = vld [vmem:[#allocation7 + $0x178] sm:$0xff]
        %v433 = vld [vmem:[#allocation7 + $0x180] sm:$0xff]
        %v434 = vld [vmem:[#allocation7 + $0x188] sm:$0xff]
        %v435 = vld [vmem:[#allocation7 + $0x190] sm:$0xff]
        %v436 = vld [vmem:[#allocation7 + $0x198] sm:$0xff]
        %v437 = vld [vmem:[#allocation7 + $0x1a0] sm:$0xff]
        %v438 = vld [vmem:[#allocation7 + $0x1a8] sm:$0xff]
        %v439 = vld [vmem:[#allocation7 + $0x1b0] sm:$0xff]
        %v440 = vld [vmem:[#allocation7 + $0x1b8] sm:$0xff]
        %v441 = vld [vmem:[#allocation7 + $0x1c0] sm:$0xff]
        %v442 = vld [vmem:[#allocation7 + $0x1c8] sm:$0xff]
        %v443 = vld [vmem:[#allocation7 + $0x1d0] sm:$0xff]
        %v444 = vld [vmem:[#allocation7 + $0x1d8] sm:$0xff]
        %v445 = vld [vmem:[#allocation7 + $0x1e0] sm:$0xff]
        %v446 = vld [vmem:[#allocation7 + $0x1e8] sm:$0xff]
        %v447 = vld [vmem:[#allocation7 + $0x1f0] sm:$0xff]
        %v448 = vld [vmem:[#allocation7 + $0x1f8] sm:$0xff]
        %v449 = vld [vmem:[#allocation7 + $0x200] sm:$0xff]
        %v450 = vld [vmem:[#allocation7 + $0x208] sm:$0xff]
        %v451 = vld [vmem:[#allocation7 + $0x210] sm:$0xff]
        %v452 = vld [vmem:[#allocation7 + $0x218] sm:$0xff]
        %v453 = vld [vmem:[#allocation7 + $0x220] sm:$0xff]
        %v454 = vld [vmem:[#allocation7 + $0x228] sm:$0xff]
        %v455 = vld [vmem:[#allocation7 + $0x230] sm:$0xff]
        %v456 = vld [vmem:[#allocation7 + $0x238] sm:$0xff]
        %v457 = vld [vmem:[#allocation7 + $0x240] sm:$0xff]
        %v458 = vld [vmem:[#allocation7 + $0x248] sm:$0xff]
        %v459 = vld [vmem:[#allocation7 + $0x250] sm:$0xff]
        %v460 = vld [vmem:[#allocation7 + $0x258] sm:$0xff]
        %v461 = vld [vmem:[#allocation7 + $0x260] sm:$0xff]
        %v462 = vld [vmem:[#allocation7 + $0x268] sm:$0xff]
        %v463 = vld [vmem:[#allocation7 + $0x270] sm:$0xff]
        %v464 = vld [vmem:[#allocation7 + $0x278] sm:$0xff]
        %v465 = vld [vmem:[#allocation7 + $0x280] sm:$0xff]
        %v466 = vld [vmem:[#allocation7 + $0x288] sm:$0xff]
        %v467 = vld [vmem:[#allocation7 + $0x290] sm:$0xff]
        %v468 = vld [vmem:[#allocation7 + $0x298] sm:$0xff]
        %v469 = vld [vmem:[#allocation7 + $0x2a0] sm:$0xff]
        %v470 = vld [vmem:[#allocation7 + $0x2a8] sm:$0xff]
        %v471 = vld [vmem:[#allocation7 + $0x2b0] sm:$0xff]
        %v472 = vld [vmem:[#allocation7 + $0x2b8] sm:$0xff]
        %v473 = vld [vmem:[#allocation7 + $0x2c0] sm:$0xff]
        %v474 = vld [vmem:[#allocation7 + $0x2c8] sm:$0xff]
        %v475 = vld [vmem:[#allocation7 + $0x2d0] sm:$0xff]
        %v476 = vld [vmem:[#allocation7 + $0x2d8] sm:$0xff]
        %v477 = vld [vmem:[#allocation7 + $0x2e0] sm:$0xff]
        %v478 = vld [vmem:[#allocation7 + $0x2e8] sm:$0xff]
        %v479 = vld [vmem:[#allocation7 + $0x2f0] sm:$0xff]
        %v480 = vld [vmem:[#allocation7 + $0x2f8] sm:$0xff]
        %v481 = vld [vmem:[#allocation7 + $0x300] sm:$0xff]
        %v482 = vld [vmem:[#allocation7 + $0x308] sm:$0xff]
        %v483 = vld [vmem:[#allocation7 + $0x310] sm:$0xff]
        %v484 = vld [vmem:[#allocation7 + $0x318] sm:$0xff]
        %v485 = vld [vmem:[#allocation7 + $0x320] sm:$0xff]
        %v486 = vld [vmem:[#allocation7 + $0x328] sm:$0xff]
        %v487 = vld [vmem:[#allocation7 + $0x330] sm:$0xff]
        %v488 = vld [vmem:[#allocation7 + $0x338] sm:$0xff]
        %v489 = vld [vmem:[#allocation7 + $0x340] sm:$0xff]
        %v490 = vld [vmem:[#allocation7 + $0x348] sm:$0xff]
        %v491 = vld [vmem:[#allocation7 + $0x350] sm:$0xff]
        %v492 = vld [vmem:[#allocation7 + $0x358] sm:$0xff]
        %v493 = vld [vmem:[#allocation7 + $0x360] sm:$0xff]
        %v494 = vld [vmem:[#allocation7 + $0x368] sm:$0xff]
        %v495 = vld [vmem:[#allocation7 + $0x370] sm:$0xff]
        %v496 = vld [vmem:[#allocation7 + $0x378] sm:$0xff]
        %v497 = vld [vmem:[#allocation7 + $0x380] sm:$0xff]
        %v498 = vld [vmem:[#allocation7 + $0x388] sm:$0xff]
        %v499 = vld [vmem:[#allocation7 + $0x390] sm:$0xff]
        %v500 = vld [vmem:[#allocation7 + $0x398] sm:$0xff]
        %v501 = vld [vmem:[#allocation7 + $0x3a0] sm:$0xff]
        %v502 = vld [vmem:[#allocation7 + $0x3a8] sm:$0xff]
        %v503 = vld [vmem:[#allocation7 + $0x3b0] sm:$0xff]
        %v504 = vld [vmem:[#allocation7 + $0x3b8] sm:$0xff]
        %v505 = vld [vmem:[#allocation7 + $0x3c0] sm:$0xff]
        %v506 = vld [vmem:[#allocation7 + $0x3c8] sm:$0xff]
        %v507 = vld [vmem:[#allocation7 + $0x3d0] sm:$0xff]
        %v508 = vld [vmem:[#allocation7 + $0x3d8] sm:$0xff]
        %v509 = vld [vmem:[#allocation7 + $0x3e0] sm:$0xff]
        %v510 = vld [vmem:[#allocation7 + $0x3e8] sm:$0xff]
        %v511 = vld [vmem:[#allocation7 + $0x3f0] sm:$0xff]
        %v512 = vld [vmem:[#allocation7 + $0x3f8] sm:$0xff]
        %v513 = vld [vmem:[#allocation7 + $0x400] sm:$0xff]
        %v514 = vld [vmem:[#allocation7 + $0x408] sm:$0xff]
        %v515 = vld [vmem:[#allocation7 + $0x410] sm:$0xff]
        %v516 = vld [vmem:[#allocation7 + $0x418] sm:$0xff]
        %v517 = vld [vmem:[#allocation7 + $0x420] sm:$0xff]
        %v518 = vld [vmem:[#allocation7 + $0x428] sm:$0xff]
        %v519 = vld [vmem:[#allocation7 + $0x430] sm:$0xff]
        %v520 = vld [vmem:[#allocation7 + $0x438] sm:$0xff]
        %v521 = vld [vmem:[#allocation7 + $0x440] sm:$0xff]
        %v522 = vld [vmem:[#allocation7 + $0x448] sm:$0xff]
        %v523 = vld [vmem:[#allocation7 + $0x450] sm:$0xff]
        %v524 = vld [vmem:[#allocation7 + $0x458] sm:$0xff]
        %v525 = vld [vmem:[#allocation7 + $0x460] sm:$0xff]
        %v526 = vld [vmem:[#allocation7 + $0x468] sm:$0xff]
        %v527 = vld [vmem:[#allocation7 + $0x470] sm:$0xff]
        %v528 = vld [vmem:[#allocation7 + $0x478] sm:$0xff]
        %v529 = vld [vmem:[#allocation7 + $0x480] sm:$0xff]
        %v530 = vld [vmem:[#allocation7 + $0x488] sm:$0xff]
        %v531 = vld [vmem:[#allocation7 + $0x490] sm:$0xff]
        %v532 = vld [vmem:[#allocation7 + $0x498] sm:$0xff]
        %v533 = vld [vmem:[#allocation7 + $0x4a0] sm:$0xff]
        %v534 = vld [vmem:[#allocation7 + $0x4a8] sm:$0xff]
        %v535 = vld [vmem:[#allocation7 + $0x4b0] sm:$0xff]
        %v536 = vld [vmem:[#allocation7 + $0x4b8] sm:$0xff]
        %v537 = vld [vmem:[#allocation7 + $0x4c0] sm:$0xff]
        %v538 = vld [vmem:[#allocation7 + $0x4c8] sm:$0xff]
        %v539 = vld [vmem:[#allocation7 + $0x4d0] sm:$0xff]
        %v540 = vld [vmem:[#allocation7 + $0x4d8] sm:$0xff]
        %v541 = vld [vmem:[#allocation7 + $0x4e0] sm:$0xff]
        %v542 = vld [vmem:[#allocation7 + $0x4e8] sm:$0xff]
        %v543 = vld [vmem:[#allocation7 + $0x4f0] sm:$0xff]
        %v544 = vld [vmem:[#allocation7 + $0x4f8] sm:$0xff]
        %v545 = vld [vmem:[#allocation7 + $0x500] sm:$0xff]
        %v546 = vld [vmem:[#allocation7 + $0x508] sm:$0xff]
        %v547 = vld [vmem:[#allocation7 + $0x510] sm:$0xff]
        %v548 = vld [vmem:[#allocation7 + $0x518] sm:$0xff]
        %v549 = vld [vmem:[#allocation7 + $0x520] sm:$0xff]
        %v550 = vld [vmem:[#allocation7 + $0x528] sm:$0xff]
        %v551 = vld [vmem:[#allocation7 + $0x530] sm:$0xff]
        %v552 = vld [vmem:[#allocation7 + $0x538] sm:$0xff]
        %v553 = vld [vmem:[#allocation7 + $0x540] sm:$0xff]
        %v554 = vld [vmem:[#allocation7 + $0x548] sm:$0xff]
        %v555 = vld [vmem:[#allocation7 + $0x550] sm:$0xff]
        %v556 = vld [vmem:[#allocation7 + $0x558] sm:$0xff]
        %v557 = vld [vmem:[#allocation7 + $0x560] sm:$0xff]
        %v558 = vld [vmem:[#allocation7 + $0x568] sm:$0xff]
        %v559 = vld [vmem:[#allocation7 + $0x570] sm:$0xff]
        %v560 = vld [vmem:[#allocation7 + $0x578] sm:$0xff]
        %v561 = vld [vmem:[#allocation7 + $0x580] sm:$0xff]
        %v562 = vld [vmem:[#allocation7 + $0x588] sm:$0xff]
        %v563 = vld [vmem:[#allocation7 + $0x590] sm:$0xff]
        %v564 = vld [vmem:[#allocation7 + $0x598] sm:$0xff]
        %v565 = vld [vmem:[#allocation7 + $0x5a0] sm:$0xff]
        %v566 = vld [vmem:[#allocation7 + $0x5a8] sm:$0xff]
        %v567 = vld [vmem:[#allocation7 + $0x5b0] sm:$0xff]
        %v568 = vld [vmem:[#allocation7 + $0x5b8] sm:$0xff]
        %v569 = vld [vmem:[#allocation7 + $0x5c0] sm:$0xff]
        %v570 = vld [vmem:[#allocation7 + $0x5c8] sm:$0xff]
        %v571 = vld [vmem:[#allocation7 + $0x5d0] sm:$0xff]
        %v572 = vld [vmem:[#allocation7 + $0x5d8] sm:$0xff]
        %v573 = vld [vmem:[#allocation7 + $0x5e0] sm:$0xff]
        %v574 = vld [vmem:[#allocation7 + $0x5e8] sm:$0xff]
        %v575 = vld [vmem:[#allocation7 + $0x5f0] sm:$0xff]
        %v576 = vld [vmem:[#allocation7 + $0x5f8] sm:$0xff]
        %v769 = vunpack.c.l.b16 %v385
        %v770 = vunpack.c.h.b16 %v385
        %v771 = vunpack.c.l.b16 %v386
        %v772 = vunpack.c.h.b16 %v386
        %v773 = vunpack.c.l.b16 %v387
        %v774 = vunpack.c.h.b16 %v387
        %v775 = vunpack.c.l.b16 %v388
        %v776 = vunpack.c.h.b16 %v388
        %v777 = vunpack.c.l.b16 %v389
        %v778 = vunpack.c.h.b16 %v389
        %v779 = vunpack.c.l.b16 %v390
        %v780 = vunpack.c.h.b16 %v390
        %v781 = vunpack.c.l.b16 %v391
        %v782 = vunpack.c.h.b16 %v391
        %v783 = vunpack.c.l.b16 %v392
        %v784 = vunpack.c.h.b16 %v392
        %v785 = vunpack.c.l.b16 %v393
        %v786 = vunpack.c.h.b16 %v393
        %v787 = vunpack.c.l.b16 %v394
        %v788 = vunpack.c.h.b16 %v394
        %v789 = vunpack.c.l.b16 %v395
        %v790 = vunpack.c.h.b16 %v395
        %v791 = vunpack.c.l.b16 %v396
        %v792 = vunpack.c.h.b16 %v396
        %v793 = vunpack.c.l.b16 %v397
        %v794 = vunpack.c.h.b16 %v397
        %v795 = vunpack.c.l.b16 %v398
        %v796 = vunpack.c.h.b16 %v398
        %v797 = vunpack.c.l.b16 %v399
        %v798 = vunpack.c.h.b16 %v399
        %v799 = vunpack.c.l.b16 %v400
        %v800 = vunpack.c.h.b16 %v400
        %v801 = vunpack.c.l.b16 %v401
        %v802 = vunpack.c.h.b16 %v401
        %v803 = vunpack.c.l.b16 %v402
        %v804 = vunpack.c.h.b16 %v402
        %v805 = vunpack.c.l.b16 %v403
        %v806 = vunpack.c.h.b16 %v403
        %v807 = vunpack.c.l.b16 %v404
        %v808 = vunpack.c.h.b16 %v404
        %v809 = vunpack.c.l.b16 %v405
        %v810 = vunpack.c.h.b16 %v405
        %v811 = vunpack.c.l.b16 %v406
        %v812 = vunpack.c.h.b16 %v406
        %v813 = vunpack.c.l.b16 %v407
        %v814 = vunpack.c.h.b16 %v407
        %v815 = vunpack.c.l.b16 %v408
        %v816 = vunpack.c.h.b16 %v408
        %v817 = vunpack.c.l.b16 %v409
        %v818 = vunpack.c.h.b16 %v409
        %v819 = vunpack.c.l.b16 %v410
        %v820 = vunpack.c.h.b16 %v410
        %v821 = vunpack.c.l.b16 %v411
        %v822 = vunpack.c.h.b16 %v411
        %v823 = vunpack.c.l.b16 %v412
        %v824 = vunpack.c.h.b16 %v412
        %v825 = vunpack.c.l.b16 %v413
        %v826 = vunpack.c.h.b16 %v413
        %v827 = vunpack.c.l.b16 %v414
        %v828 = vunpack.c.h.b16 %v414
        %v829 = vunpack.c.l.b16 %v415
        %v830 = vunpack.c.h.b16 %v415
        %v831 = vunpack.c.l.b16 %v416
        %v832 = vunpack.c.h.b16 %v416
        %v833 = vunpack.c.l.b16 %v417
        %v834 = vunpack.c.h.b16 %v417
        %v835 = vunpack.c.l.b16 %v418
        %v836 = vunpack.c.h.b16 %v418
        %v837 = vunpack.c.l.b16 %v419
        %v838 = vunpack.c.h.b16 %v419
        %v839 = vunpack.c.l.b16 %v420
        %v840 = vunpack.c.h.b16 %v420
        %v841 = vunpack.c.l.b16 %v421
        %v842 = vunpack.c.h.b16 %v421
        %v843 = vunpack.c.l.b16 %v422
        %v844 = vunpack.c.h.b16 %v422
        %v845 = vunpack.c.l.b16 %v423
        %v846 = vunpack.c.h.b16 %v423
        %v847 = vunpack.c.l.b16 %v424
        %v848 = vunpack.c.h.b16 %v424
        %v849 = vunpack.c.l.b16 %v425
        %v850 = vunpack.c.h.b16 %v425
        %v851 = vunpack.c.l.b16 %v426
        %v852 = vunpack.c.h.b16 %v426
        %v853 = vunpack.c.l.b16 %v427
        %v854 = vunpack.c.h.b16 %v427
        %v855 = vunpack.c.l.b16 %v428
        %v856 = vunpack.c.h.b16 %v428
        %v857 = vunpack.c.l.b16 %v429
        %v858 = vunpack.c.h.b16 %v429
        %v859 = vunpack.c.l.b16 %v430
        %v860 = vunpack.c.h.b16 %v430
        %v861 = vunpack.c.l.b16 %v431
        %v862 = vunpack.c.h.b16 %v431
        %v863 = vunpack.c.l.b16 %v432
        %v864 = vunpack.c.h.b16 %v432
        %v865 = vunpack.c.l.b16 %v433
        %v866 = vunpack.c.h.b16 %v433
        %v867 = vunpack.c.l.b16 %v434
        %v868 = vunpack.c.h.b16 %v434
        %v869 = vunpack.c.l.b16 %v435
        %v870 = vunpack.c.h.b16 %v435
        %v871 = vunpack.c.l.b16 %v436
        %v872 = vunpack.c.h.b16 %v436
        %v873 = vunpack.c.l.b16 %v437
        %v874 = vunpack.c.h.b16 %v437
        %v875 = vunpack.c.l.b16 %v438
        %v876 = vunpack.c.h.b16 %v438
        %v877 = vunpack.c.l.b16 %v439
        %v878 = vunpack.c.h.b16 %v439
        %v879 = vunpack.c.l.b16 %v440
        %v880 = vunpack.c.h.b16 %v440
        %v881 = vunpack.c.l.b16 %v441
        %v882 = vunpack.c.h.b16 %v441
        %v883 = vunpack.c.l.b16 %v442
        %v884 = vunpack.c.h.b16 %v442
        %v885 = vunpack.c.l.b16 %v443
        %v886 = vunpack.c.h.b16 %v443
        %v887 = vunpack.c.l.b16 %v444
        %v888 = vunpack.c.h.b16 %v444
        %v889 = vunpack.c.l.b16 %v445
        %v890 = vunpack.c.h.b16 %v445
        %v891 = vunpack.c.l.b16 %v446
        %v892 = vunpack.c.h.b16 %v446
        %v893 = vunpack.c.l.b16 %v447
        %v894 = vunpack.c.h.b16 %v447
        %v895 = vunpack.c.l.b16 %v448
        %v896 = vunpack.c.h.b16 %v448
        %v897 = vunpack.c.l.b16 %v449
        %v898 = vunpack.c.h.b16 %v449
        %v899 = vunpack.c.l.b16 %v450
        %v900 = vunpack.c.h.b16 %v450
        %v901 = vunpack.c.l.b16 %v451
        %v902 = vunpack.c.h.b16 %v451
        %v903 = vunpack.c.l.b16 %v452
        %v904 = vunpack.c.h.b16 %v452
        %v905 = vunpack.c.l.b16 %v453
        %v906 = vunpack.c.h.b16 %v453
        %v907 = vunpack.c.l.b16 %v454
        %v908 = vunpack.c.h.b16 %v454
        %v909 = vunpack.c.l.b16 %v455
        %v910 = vunpack.c.h.b16 %v455
        %v911 = vunpack.c.l.b16 %v456
        %v912 = vunpack.c.h.b16 %v456
        %v913 = vunpack.c.l.b16 %v457
        %v914 = vunpack.c.h.b16 %v457
        %v915 = vunpack.c.l.b16 %v458
        %v916 = vunpack.c.h.b16 %v458
        %v917 = vunpack.c.l.b16 %v459
        %v918 = vunpack.c.h.b16 %v459
        %v919 = vunpack.c.l.b16 %v460
        %v920 = vunpack.c.h.b16 %v460
        %v921 = vunpack.c.l.b16 %v461
        %v922 = vunpack.c.h.b16 %v461
        %v923 = vunpack.c.l.b16 %v462
        %v924 = vunpack.c.h.b16 %v462
        %v925 = vunpack.c.l.b16 %v463
        %v926 = vunpack.c.h.b16 %v463
        %v927 = vunpack.c.l.b16 %v464
        %v928 = vunpack.c.h.b16 %v464
        %v929 = vunpack.c.l.b16 %v465
        %v930 = vunpack.c.h.b16 %v465
        %v931 = vunpack.c.l.b16 %v466
        %v932 = vunpack.c.h.b16 %v466
        %v933 = vunpack.c.l.b16 %v467
        %v934 = vunpack.c.h.b16 %v467
        %v935 = vunpack.c.l.b16 %v468
        %v936 = vunpack.c.h.b16 %v468
        %v937 = vunpack.c.l.b16 %v469
        %v938 = vunpack.c.h.b16 %v469
        %v939 = vunpack.c.l.b16 %v470
        %v940 = vunpack.c.h.b16 %v470
        %v941 = vunpack.c.l.b16 %v471
        %v942 = vunpack.c.h.b16 %v471
        %v943 = vunpack.c.l.b16 %v472
        %v944 = vunpack.c.h.b16 %v472
        %v945 = vunpack.c.l.b16 %v473
        %v946 = vunpack.c.h.b16 %v473
        %v947 = vunpack.c.l.b16 %v474
        %v948 = vunpack.c.h.b16 %v474
        %v949 = vunpack.c.l.b16 %v475
        %v950 = vunpack.c.h.b16 %v475
        %v951 = vunpack.c.l.b16 %v476
        %v952 = vunpack.c.h.b16 %v476
        %v953 = vunpack.c.l.b16 %v477
        %v954 = vunpack.c.h.b16 %v477
        %v955 = vunpack.c.l.b16 %v478
        %v956 = vunpack.c.h.b16 %v478
        %v957 = vunpack.c.l.b16 %v479
        %v958 = vunpack.c.h.b16 %v479
        %v959 = vunpack.c.l.b16 %v480
        %v960 = vunpack.c.h.b16 %v480
        %v961 = vunpack.c.l.b16 %v481
        %v962 = vunpack.c.h.b16 %v481
        %v963 = vunpack.c.l.b16 %v482
        %v964 = vunpack.c.h.b16 %v482
        %v965 = vunpack.c.l.b16 %v483
        %v966 = vunpack.c.h.b16 %v483
        %v967 = vunpack.c.l.b16 %v484
        %v968 = vunpack.c.h.b16 %v484
        %v969 = vunpack.c.l.b16 %v485
        %v970 = vunpack.c.h.b16 %v485
        %v971 = vunpack.c.l.b16 %v486
        %v972 = vunpack.c.h.b16 %v486
        %v973 = vunpack.c.l.b16 %v487
        %v974 = vunpack.c.h.b16 %v487
        %v975 = vunpack.c.l.b16 %v488
        %v976 = vunpack.c.h.b16 %v488
        %v977 = vunpack.c.l.b16 %v489
        %v978 = vunpack.c.h.b16 %v489
        %v979 = vunpack.c.l.b16 %v490
        %v980 = vunpack.c.h.b16 %v490
        %v981 = vunpack.c.l.b16 %v491
        %v982 = vunpack.c.h.b16 %v491
        %v983 = vunpack.c.l.b16 %v492
        %v984 = vunpack.c.h.b16 %v492
        %v985 = vunpack.c.l.b16 %v493
        %v986 = vunpack.c.h.b16 %v493
        %v987 = vunpack.c.l.b16 %v494
        %v988 = vunpack.c.h.b16 %v494
        %v989 = vunpack.c.l.b16 %v495
        %v990 = vunpack.c.h.b16 %v495
        %v991 = vunpack.c.l.b16 %v496
        %v992 = vunpack.c.h.b16 %v496
        %v993 = vunpack.c.l.b16 %v497
        %v994 = vunpack.c.h.b16 %v497
        %v995 = vunpack.c.l.b16 %v498
        %v996 = vunpack.c.h.b16 %v498
        %v997 = vunpack.c.l.b16 %v499
        %v998 = vunpack.c.h.b16 %v499
        %v999 = vunpack.c.l.b16 %v500
        %v1000 = vunpack.c.h.b16 %v500
        %v1001 = vunpack.c.l.b16 %v501
        %v1002 = vunpack.c.h.b16 %v501
        %v1003 = vunpack.c.l.b16 %v502
        %v1004 = vunpack.c.h.b16 %v502
        %v1005 = vunpack.c.l.b16 %v503
        %v1006 = vunpack.c.h.b16 %v503
        %v1007 = vunpack.c.l.b16 %v504
        %v1008 = vunpack.c.h.b16 %v504
        %v1009 = vunpack.c.l.b16 %v505
        %v1010 = vunpack.c.h.b16 %v505
        %v1011 = vunpack.c.l.b16 %v506
        %v1012 = vunpack.c.h.b16 %v506
        %v1013 = vunpack.c.l.b16 %v507
        %v1014 = vunpack.c.h.b16 %v507
        %v1015 = vunpack.c.l.b16 %v508
        %v1016 = vunpack.c.h.b16 %v508
        %v1017 = vunpack.c.l.b16 %v509
        %v1018 = vunpack.c.h.b16 %v509
        %v1019 = vunpack.c.l.b16 %v510
        %v1020 = vunpack.c.h.b16 %v510
        %v1021 = vunpack.c.l.b16 %v511
        %v1022 = vunpack.c.h.b16 %v511
        %v1023 = vunpack.c.l.b16 %v512
        %v1024 = vunpack.c.h.b16 %v512
        %v1025 = vunpack.c.l.b16 %v513
        %v1026 = vunpack.c.h.b16 %v513
        %v1027 = vunpack.c.l.b16 %v514
        %v1028 = vunpack.c.h.b16 %v514
        %v1029 = vunpack.c.l.b16 %v515
        %v1030 = vunpack.c.h.b16 %v515
        %v1031 = vunpack.c.l.b16 %v516
        %v1032 = vunpack.c.h.b16 %v516
        %v1033 = vunpack.c.l.b16 %v517
        %v1034 = vunpack.c.h.b16 %v517
        %v1035 = vunpack.c.l.b16 %v518
        %v1036 = vunpack.c.h.b16 %v518
        %v1037 = vunpack.c.l.b16 %v519
        %v1038 = vunpack.c.h.b16 %v519
        %v1039 = vunpack.c.l.b16 %v520
        %v1040 = vunpack.c.h.b16 %v520
        %v1041 = vunpack.c.l.b16 %v521
        %v1042 = vunpack.c.h.b16 %v521
        %v1043 = vunpack.c.l.b16 %v522
        %v1044 = vunpack.c.h.b16 %v522
        %v1045 = vunpack.c.l.b16 %v523
        %v1046 = vunpack.c.h.b16 %v523
        %v1047 = vunpack.c.l.b16 %v524
        %v1048 = vunpack.c.h.b16 %v524
        %v1049 = vunpack.c.l.b16 %v525
        %v1050 = vunpack.c.h.b16 %v525
        %v1051 = vunpack.c.l.b16 %v526
        %v1052 = vunpack.c.h.b16 %v526
        %v1053 = vunpack.c.l.b16 %v527
        %v1054 = vunpack.c.h.b16 %v527
        %v1055 = vunpack.c.l.b16 %v528
        %v1056 = vunpack.c.h.b16 %v528
        %v1057 = vunpack.c.l.b16 %v529
        %v1058 = vunpack.c.h.b16 %v529
        %v1059 = vunpack.c.l.b16 %v530
        %v1060 = vunpack.c.h.b16 %v530
        %v1061 = vunpack.c.l.b16 %v531
        %v1062 = vunpack.c.h.b16 %v531
        %v1063 = vunpack.c.l.b16 %v532
        %v1064 = vunpack.c.h.b16 %v532
        %v1065 = vunpack.c.l.b16 %v533
        %v1066 = vunpack.c.h.b16 %v533
        %v1067 = vunpack.c.l.b16 %v534
        %v1068 = vunpack.c.h.b16 %v534
        %v1069 = vunpack.c.l.b16 %v535
        %v1070 = vunpack.c.h.b16 %v535
        %v1071 = vunpack.c.l.b16 %v536
        %v1072 = vunpack.c.h.b16 %v536
        %v1073 = vunpack.c.l.b16 %v537
        %v1074 = vunpack.c.h.b16 %v537
        %v1075 = vunpack.c.l.b16 %v538
        %v1076 = vunpack.c.h.b16 %v538
        %v1077 = vunpack.c.l.b16 %v539
        %v1078 = vunpack.c.h.b16 %v539
        %v1079 = vunpack.c.l.b16 %v540
        %v1080 = vunpack.c.h.b16 %v540
        %v1081 = vunpack.c.l.b16 %v541
        %v1082 = vunpack.c.h.b16 %v541
        %v1083 = vunpack.c.l.b16 %v542
        %v1084 = vunpack.c.h.b16 %v542
        %v1085 = vunpack.c.l.b16 %v543
        %v1086 = vunpack.c.h.b16 %v543
        %v1087 = vunpack.c.l.b16 %v544
        %v1088 = vunpack.c.h.b16 %v544
        %v1089 = vunpack.c.l.b16 %v545
        %v1090 = vunpack.c.h.b16 %v545
        %v1091 = vunpack.c.l.b16 %v546
        %v1092 = vunpack.c.h.b16 %v546
        %v1093 = vunpack.c.l.b16 %v547
        %v1094 = vunpack.c.h.b16 %v547
        %v1095 = vunpack.c.l.b16 %v548
        %v1096 = vunpack.c.h.b16 %v548
        %v1097 = vunpack.c.l.b16 %v549
        %v1098 = vunpack.c.h.b16 %v549
        %v1099 = vunpack.c.l.b16 %v550
        %v1100 = vunpack.c.h.b16 %v550
        %v1101 = vunpack.c.l.b16 %v551
        %v1102 = vunpack.c.h.b16 %v551
        %v1103 = vunpack.c.l.b16 %v552
        %v1104 = vunpack.c.h.b16 %v552
        %v1105 = vunpack.c.l.b16 %v553
        %v1106 = vunpack.c.h.b16 %v553
        %v1107 = vunpack.c.l.b16 %v554
        %v1108 = vunpack.c.h.b16 %v554
        %v1109 = vunpack.c.l.b16 %v555
        %v1110 = vunpack.c.h.b16 %v555
        %v1111 = vunpack.c.l.b16 %v556
        %v1112 = vunpack.c.h.b16 %v556
        %v1113 = vunpack.c.l.b16 %v557
        %v1114 = vunpack.c.h.b16 %v557
        %v1115 = vunpack.c.l.b16 %v558
        %v1116 = vunpack.c.h.b16 %v558
        %v1117 = vunpack.c.l.b16 %v559
        %v1118 = vunpack.c.h.b16 %v559
        %v1119 = vunpack.c.l.b16 %v560
        %v1120 = vunpack.c.h.b16 %v560
        %v1121 = vunpack.c.l.b16 %v561
        %v1122 = vunpack.c.h.b16 %v561
        %v1123 = vunpack.c.l.b16 %v562
        %v1124 = vunpack.c.h.b16 %v562
        %v1125 = vunpack.c.l.b16 %v563
        %v1126 = vunpack.c.h.b16 %v563
        %v1127 = vunpack.c.l.b16 %v564
        %v1128 = vunpack.c.h.b16 %v564
        %v1129 = vunpack.c.l.b16 %v565
        %v1130 = vunpack.c.h.b16 %v565
        %v1131 = vunpack.c.l.b16 %v566
        %v1132 = vunpack.c.h.b16 %v566
        %v1133 = vunpack.c.l.b16 %v567
        %v1134 = vunpack.c.h.b16 %v567
        %v1135 = vunpack.c.l.b16 %v568
        %v1136 = vunpack.c.h.b16 %v568
        %v1137 = vunpack.c.l.b16 %v569
        %v1138 = vunpack.c.h.b16 %v569
        %v1139 = vunpack.c.l.b16 %v570
        %v1140 = vunpack.c.h.b16 %v570
        %v1141 = vunpack.c.l.b16 %v571
        %v1142 = vunpack.c.h.b16 %v571
        %v1143 = vunpack.c.l.b16 %v572
        %v1144 = vunpack.c.h.b16 %v572
        %v1145 = vunpack.c.l.b16 %v573
        %v1146 = vunpack.c.h.b16 %v573
        %v1147 = vunpack.c.l.b16 %v574
        %v1148 = vunpack.c.h.b16 %v574
        %v1149 = vunpack.c.l.b16 %v575
        %v1150 = vunpack.c.h.b16 %v575
        %v1151 = vunpack.c.l.b16 %v576
        %v1152 = vunpack.c.h.b16 %v576
        %v1153 = vpack.c.b16 %v775, %v769
        %v1154 = vpack.c.b16 %v776, %v770
        %v1155 = vpack.c.b16 %v777, %v771
        %v1156 = vpack.c.b16 %v778, %v772
        %v1157 = vpack.c.b16 %v779, %v773
        %v1158 = vpack.c.b16 %v780, %v774
        %v1159 = vpack.c.b16 %v787, %v781
        %v1160 = vpack.c.b16 %v788, %v782
        %v1161 = vpack.c.b16 %v789, %v783
        %v1162 = vpack.c.b16 %v790, %v784
        %v1163 = vpack.c.b16 %v791, %v785
        %v1164 = vpack.c.b16 %v792, %v786
        %v1165 = vpack.c.b16 %v799, %v793
        %v1166 = vpack.c.b16 %v800, %v794
        %v1167 = vpack.c.b16 %v801, %v795
        %v1168 = vpack.c.b16 %v802, %v796
        %v1169 = vpack.c.b16 %v803, %v797
        %v1170 = vpack.c.b16 %v804, %v798
        %v1171 = vpack.c.b16 %v811, %v805
        %v1172 = vpack.c.b16 %v812, %v806
        %v1173 = vpack.c.b16 %v813, %v807
        %v1174 = vpack.c.b16 %v814, %v808
        %v1175 = vpack.c.b16 %v815, %v809
        %v1176 = vpack.c.b16 %v816, %v810
        %v1177 = vpack.c.b16 %v823, %v817
        %v1178 = vpack.c.b16 %v824, %v818
        %v1179 = vpack.c.b16 %v825, %v819
        %v1180 = vpack.c.b16 %v826, %v820
        %v1181 = vpack.c.b16 %v827, %v821
        %v1182 = vpack.c.b16 %v828, %v822
        %v1183 = vpack.c.b16 %v835, %v829
        %v1184 = vpack.c.b16 %v836, %v830
        %v1185 = vpack.c.b16 %v837, %v831
        %v1186 = vpack.c.b16 %v838, %v832
        %v1187 = vpack.c.b16 %v839, %v833
        %v1188 = vpack.c.b16 %v840, %v834
        %v1189 = vpack.c.b16 %v847, %v841
        %v1190 = vpack.c.b16 %v848, %v842
        %v1191 = vpack.c.b16 %v849, %v843
        %v1192 = vpack.c.b16 %v850, %v844
        %v1193 = vpack.c.b16 %v851, %v845
        %v1194 = vpack.c.b16 %v852, %v846
        %v1195 = vpack.c.b16 %v859, %v853
        %v1196 = vpack.c.b16 %v860, %v854
        %v1197 = vpack.c.b16 %v861, %v855
        %v1198 = vpack.c.b16 %v862, %v856
        %v1199 = vpack.c.b16 %v863, %v857
        %v1200 = vpack.c.b16 %v864, %v858
        %v1201 = vpack.c.b16 %v871, %v865
        %v1202 = vpack.c.b16 %v872, %v866
        %v1203 = vpack.c.b16 %v873, %v867
        %v1204 = vpack.c.b16 %v874, %v868
        %v1205 = vpack.c.b16 %v875, %v869
        %v1206 = vpack.c.b16 %v876, %v870
        %v1207 = vpack.c.b16 %v883, %v877
        %v1208 = vpack.c.b16 %v884, %v878
        %v1209 = vpack.c.b16 %v885, %v879
        %v1210 = vpack.c.b16 %v886, %v880
        %v1211 = vpack.c.b16 %v887, %v881
        %v1212 = vpack.c.b16 %v888, %v882
        %v1213 = vpack.c.b16 %v895, %v889
        %v1214 = vpack.c.b16 %v896, %v890
        %v1215 = vpack.c.b16 %v897, %v891
        %v1216 = vpack.c.b16 %v898, %v892
        %v1217 = vpack.c.b16 %v899, %v893
        %v1218 = vpack.c.b16 %v900, %v894
        %v1219 = vpack.c.b16 %v907, %v901
        %v1220 = vpack.c.b16 %v908, %v902
        %v1221 = vpack.c.b16 %v909, %v903
        %v1222 = vpack.c.b16 %v910, %v904
        %v1223 = vpack.c.b16 %v911, %v905
        %v1224 = vpack.c.b16 %v912, %v906
        %v1225 = vpack.c.b16 %v919, %v913
        %v1226 = vpack.c.b16 %v920, %v914
        %v1227 = vpack.c.b16 %v921, %v915
        %v1228 = vpack.c.b16 %v922, %v916
        %v1229 = vpack.c.b16 %v923, %v917
        %v1230 = vpack.c.b16 %v924, %v918
        %v1231 = vpack.c.b16 %v931, %v925
        %v1232 = vpack.c.b16 %v932, %v926
        %v1233 = vpack.c.b16 %v933, %v927
        %v1234 = vpack.c.b16 %v934, %v928
        %v1235 = vpack.c.b16 %v935, %v929
        %v1236 = vpack.c.b16 %v936, %v930
        %v1237 = vpack.c.b16 %v943, %v937
        %v1238 = vpack.c.b16 %v944, %v938
        %v1239 = vpack.c.b16 %v945, %v939
        %v1240 = vpack.c.b16 %v946, %v940
        %v1241 = vpack.c.b16 %v947, %v941
        %v1242 = vpack.c.b16 %v948, %v942
        %v1243 = vpack.c.b16 %v955, %v949
        %v1244 = vpack.c.b16 %v956, %v950
        %v1245 = vpack.c.b16 %v957, %v951
        %v1246 = vpack.c.b16 %v958, %v952
        %v1247 = vpack.c.b16 %v959, %v953
        %v1248 = vpack.c.b16 %v960, %v954
        %v1249 = vpack.c.b16 %v967, %v961
        %v1250 = vpack.c.b16 %v968, %v962
        %v1251 = vpack.c.b16 %v969, %v963
        %v1252 = vpack.c.b16 %v970, %v964
        %v1253 = vpack.c.b16 %v971, %v965
        %v1254 = vpack.c.b16 %v972, %v966
        %v1255 = vpack.c.b16 %v979, %v973
        %v1256 = vpack.c.b16 %v980, %v974
        %v1257 = vpack.c.b16 %v981, %v975
        %v1258 = vpack.c.b16 %v982, %v976
        %v1259 = vpack.c.b16 %v983, %v977
        %v1260 = vpack.c.b16 %v984, %v978
        %v1261 = vpack.c.b16 %v991, %v985
        %v1262 = vpack.c.b16 %v992, %v986
        %v1263 = vpack.c.b16 %v993, %v987
        %v1264 = vpack.c.b16 %v994, %v988
        %v1265 = vpack.c.b16 %v995, %v989
        %v1266 = vpack.c.b16 %v996, %v990
        %v1267 = vpack.c.b16 %v1003, %v997
        %v1268 = vpack.c.b16 %v1004, %v998
        %v1269 = vpack.c.b16 %v1005, %v999
        %v1270 = vpack.c.b16 %v1006, %v1000
        %v1271 = vpack.c.b16 %v1007, %v1001
        %v1272 = vpack.c.b16 %v1008, %v1002
        %v1273 = vpack.c.b16 %v1015, %v1009
        %v1274 = vpack.c.b16 %v1016, %v1010
        %v1275 = vpack.c.b16 %v1017, %v1011
        %v1276 = vpack.c.b16 %v1018, %v1012
        %v1277 = vpack.c.b16 %v1019, %v1013
        %v1278 = vpack.c.b16 %v1020, %v1014
        %v1279 = vpack.c.b16 %v1027, %v1021
        %v1280 = vpack.c.b16 %v1028, %v1022
        %v1281 = vpack.c.b16 %v1029, %v1023
        %v1282 = vpack.c.b16 %v1030, %v1024
        %v1283 = vpack.c.b16 %v1031, %v1025
        %v1284 = vpack.c.b16 %v1032, %v1026
        %v1285 = vpack.c.b16 %v1039, %v1033
        %v1286 = vpack.c.b16 %v1040, %v1034
        %v1287 = vpack.c.b16 %v1041, %v1035
        %v1288 = vpack.c.b16 %v1042, %v1036
        %v1289 = vpack.c.b16 %v1043, %v1037
        %v1290 = vpack.c.b16 %v1044, %v1038
        %v1291 = vpack.c.b16 %v1051, %v1045
        %v1292 = vpack.c.b16 %v1052, %v1046
        %v1293 = vpack.c.b16 %v1053, %v1047
        %v1294 = vpack.c.b16 %v1054, %v1048
        %v1295 = vpack.c.b16 %v1055, %v1049
        %v1296 = vpack.c.b16 %v1056, %v1050
        %v1297 = vpack.c.b16 %v1063, %v1057
        %v1298 = vpack.c.b16 %v1064, %v1058
        %v1299 = vpack.c.b16 %v1065, %v1059
        %v1300 = vpack.c.b16 %v1066, %v1060
        %v1301 = vpack.c.b16 %v1067, %v1061
        %v1302 = vpack.c.b16 %v1068, %v1062
        %v1303 = vpack.c.b16 %v1075, %v1069
        %v1304 = vpack.c.b16 %v1076, %v1070
        %v1305 = vpack.c.b16 %v1077, %v1071
        %v1306 = vpack.c.b16 %v1078, %v1072
        %v1307 = vpack.c.b16 %v1079, %v1073
        %v1308 = vpack.c.b16 %v1080, %v1074
        %v1309 = vpack.c.b16 %v1087, %v1081
        %v1310 = vpack.c.b16 %v1088, %v1082
        %v1311 = vpack.c.b16 %v1089, %v1083
        %v1312 = vpack.c.b16 %v1090, %v1084
        %v1313 = vpack.c.b16 %v1091, %v1085
        %v1314 = vpack.c.b16 %v1092, %v1086
        %v1315 = vpack.c.b16 %v1099, %v1093
        %v1316 = vpack.c.b16 %v1100, %v1094
        %v1317 = vpack.c.b16 %v1101, %v1095
        %v1318 = vpack.c.b16 %v1102, %v1096
        %v1319 = vpack.c.b16 %v1103, %v1097
        %v1320 = vpack.c.b16 %v1104, %v1098
        %v1321 = vpack.c.b16 %v1111, %v1105
        %v1322 = vpack.c.b16 %v1112, %v1106
        %v1323 = vpack.c.b16 %v1113, %v1107
        %v1324 = vpack.c.b16 %v1114, %v1108
        %v1325 = vpack.c.b16 %v1115, %v1109
        %v1326 = vpack.c.b16 %v1116, %v1110
        %v1327 = vpack.c.b16 %v1123, %v1117
        %v1328 = vpack.c.b16 %v1124, %v1118
        %v1329 = vpack.c.b16 %v1125, %v1119
        %v1330 = vpack.c.b16 %v1126, %v1120
        %v1331 = vpack.c.b16 %v1127, %v1121
        %v1332 = vpack.c.b16 %v1128, %v1122
        %v1333 = vpack.c.b16 %v1135, %v1129
        %v1334 = vpack.c.b16 %v1136, %v1130
        %v1335 = vpack.c.b16 %v1137, %v1131
        %v1336 = vpack.c.b16 %v1138, %v1132
        %v1337 = vpack.c.b16 %v1139, %v1133
        %v1338 = vpack.c.b16 %v1140, %v1134
        %v1339 = vpack.c.b16 %v1147, %v1141
        %v1340 = vpack.c.b16 %v1148, %v1142
        %v1341 = vpack.c.b16 %v1149, %v1143
        %v1342 = vpack.c.b16 %v1150, %v1144
        %v1343 = vpack.c.b16 %v1151, %v1145
        %v1344 = vpack.c.b16 %v1152, %v1146
        %1537 = vmatprep.subr.bf16.mxu0 %v1154
        %1538 = vmatpush1.bf16.msra.mxu0 %v1153
        %1539 = vmatprep.subr.bf16.mxu0 %v1160
        %1540 = vmatpush1.bf16.msra.mxu0 %v1159
        %1541 = vmatprep.subr.bf16.mxu0 %v1166
        %1542 = vmatpush1.bf16.msra.mxu0 %v1165
        %1543 = vmatprep.subr.bf16.mxu0 %v1172
        %1544 = vmatpush1.bf16.msra.mxu0 %v1171
        %1545 = vmatprep.subr.bf16.mxu0 %v1178
        %1546 = vmatpush1.bf16.msra.mxu0 %v1177
        %1547 = vmatprep.subr.bf16.mxu0 %v1184
        %1548 = vmatpush1.bf16.msra.mxu0 %v1183
        %1549 = vmatprep.subr.bf16.mxu0 %v1190
        %1550 = vmatpush1.bf16.msra.mxu0 %v1189
        %1551 = vmatprep.subr.bf16.mxu0 %v1196
        %1552 = vmatpush1.bf16.msra.mxu0 %v1195
        %1553 = vmatprep.subr.bf16.mxu0 %v1202
        %1554 = vmatpush1.bf16.msra.mxu0 %v1201
        %1555 = vmatprep.subr.bf16.mxu0 %v1208
        %1556 = vmatpush1.bf16.msra.mxu0 %v1207
        %1557 = vmatprep.subr.bf16.mxu0 %v1214
        %1558 = vmatpush1.bf16.msra.mxu0 %v1213
        %1559 = vmatprep.subr.bf16.mxu0 %v1220
        %1560 = vmatpush1.bf16.msra.mxu0 %v1219
        %1561 = vmatprep.subr.bf16.mxu0 %v1226
        %1562 = vmatpush1.bf16.msra.mxu0 %v1225
        %1563 = vmatprep.subr.bf16.mxu0 %v1232
        %1564 = vmatpush1.bf16.msra.mxu0 %v1231
        %1565 = vmatprep.subr.bf16.mxu0 %v1238
        %1566 = vmatpush1.bf16.msra.mxu0 %v1237
        %1567 = vmatprep.subr.bf16.mxu0 %v1244
        %1568 = vmatpush1.bf16.msra.mxu0 %v1243
        %1569 = vmatprep.mubr.bf16.mxu0 %v378
        %1570 = vmatmul.mubr.bf16.gmra.mrb[0].mxu0 %v377
        %v1571 = vpop.f32.mrb[0].mxu0
        %v1572 = vadd.f32 0.0, %v1571
        %v1573 = vpop.f32.mrb[0].mxu0
        %v1574 = vadd.f32 0.0, %v1573
        %v1575 = vpop.f32.mrb[0].mxu0
        %v1576 = vadd.f32 0.0, %v1575
        %v1577 = vpop.f32.mrb[0].mxu0
        %v1578 = vadd.f32 0.0, %v1577
        %1579 = vmatprep.mubr.bf16.mxu0 %v382
        %1580 = vmatmul.mubr.bf16.gmra.mrb[0].mxu0 %v381
        %v1581 = vpop.f32.mrb[0].mxu0
        %v1582 = vadd.f32 0.0, %v1581
        %v1583 = vpop.f32.mrb[0].mxu0
        %v1584 = vadd.f32 0.0, %v1583
        %v1585 = vpop.f32.mrb[0].mxu0
        %v1586 = vadd.f32 0.0, %v1585
        %v1587 = vpop.f32.mrb[0].mxu0
        %v1588 = vadd.f32 0.0, %v1587
        %1589 = vdwg.mxu0
        %1590 = vmatprep.subr.bf16.mxu0 %v1250
        %1591 = vmatpush1.bf16.msra.mxu0 %v1249
        %1592 = vmatprep.subr.bf16.mxu0 %v1256
        %1593 = vmatpush1.bf16.msra.mxu0 %v1255
        %1594 = vmatprep.subr.bf16.mxu0 %v1262
        %1595 = vmatpush1.bf16.msra.mxu0 %v1261
        %1596 = vmatprep.subr.bf16.mxu0 %v1268
        %1597 = vmatpush1.bf16.msra.mxu0 %v1267
        %1598 = vmatprep.subr.bf16.mxu0 %v1274
        %1599 = vmatpush1.bf16.msra.mxu0 %v1273
        %1600 = vmatprep.subr.bf16.mxu0 %v1280
        %1601 = vmatpush1.bf16.msra.mxu0 %v1279
        %1602 = vmatprep.subr.bf16.mxu0 %v1286
        %1603 = vmatpush1.bf16.msra.mxu0 %v1285
        %1604 = vmatprep.subr.bf16.mxu0 %v1292
        %1605 = vmatpush1.bf16.msra.mxu0 %v1291
        %1606 = vmatprep.subr.bf16.mxu0 %v1298
        %1607 = vmatpush1.bf16.msra.mxu0 %v1297
        %1608 = vmatprep.subr.bf16.mxu0 %v1304
        %1609 = vmatpush1.bf16.msra.mxu0 %v1303
        %1610 = vmatprep.subr.bf16.mxu0 %v1310
        %1611 = vmatpush1.bf16.msra.mxu0 %v1309
        %1612 = vmatprep.subr.bf16.mxu0 %v1316
        %1613 = vmatpush1.bf16.msra.mxu0 %v1315
        %1614 = vmatprep.subr.bf16.mxu0 %v1322
        %1615 = vmatpush1.bf16.msra.mxu0 %v1321
        %1616 = vmatprep.subr.bf16.mxu0 %v1328
        %1617 = vmatpush1.bf16.msra.mxu0 %v1327
        %1618 = vmatprep.subr.bf16.mxu0 %v1334
        %1619 = vmatpush1.bf16.msra.mxu0 %v1333
        %1620 = vmatprep.subr.bf16.mxu0 %v1340
        %1621 = vmatpush1.bf16.msra.mxu0 %v1339
        %1622 = vmatprep.mubr.bf16.mxu0 %v380
        %1623 = vmatmul.mubr.bf16.gmra.mrb[0].mxu0 %v379
        %v1624 = vpop.f32.mrb[0].mxu0
        %v1625 = vadd.f32 %v1572, %v1624
        %v1626 = vpop.f32.mrb[0].mxu0
        %v1627 = vadd.f32 %v1574, %v1626
        %v1628 = vpop.f32.mrb[0].mxu0
        %v1629 = vadd.f32 %v1576, %v1628
        %v1630 = vpop.f32.mrb[0].mxu0
        %v1631 = vadd.f32 %v1578, %v1630
        %1632 = vmatprep.mubr.bf16.mxu0 %v384
        %1633 = vmatmul.mubr.bf16.gmra.mrb[0].mxu0 %v383
        %v1634 = vpop.f32.mrb[0].mxu0
        %v1635 = vadd.f32 %v1582, %v1634
        %v1636 = vpop.f32.mrb[0].mxu0
        %v1637 = vadd.f32 %v1584, %v1636
        %v1638 = vpop.f32.mrb[0].mxu0
        %v1639 = vadd.f32 %v1586, %v1638
        %v1640 = vpop.f32.mrb[0].mxu0
        %v1641 = vadd.f32 %v1588, %v1640
        %1642 = vdwg.mxu0
        %1643 = vmatprep.subr.bf16.mxu0 %v1156
        %1644 = vmatpush1.bf16.msra.mxu0 %v1155
        %1645 = vmatprep.subr.bf16.mxu0 %v1162
        %1646 = vmatpush1.bf16.msra.mxu0 %v1161
        %1647 = vmatprep.subr.bf16.mxu0 %v1168
        %1648 = vmatpush1.bf16.msra.mxu0 %v1167
        %1649 = vmatprep.subr.bf16.mxu0 %v1174
        %1650 = vmatpush1.bf16.msra.mxu0 %v1173
        %1651 = vmatprep.subr.bf16.mxu0 %v1180
        %1652 = vmatpush1.bf16.msra.mxu0 %v1179
        %1653 = vmatprep.subr.bf16.mxu0 %v1186
        %1654 = vmatpush1.bf16.msra.mxu0 %v1185
        %1655 = vmatprep.subr.bf16.mxu0 %v1192
        %1656 = vmatpush1.bf16.msra.mxu0 %v1191
        %1657 = vmatprep.subr.bf16.mxu0 %v1198
        %1658 = vmatpush1.bf16.msra.mxu0 %v1197
        %1659 = vmatprep.subr.bf16.mxu0 %v1204
        %1660 = vmatpush1.bf16.msra.mxu0 %v1203
        %1661 = vmatprep.subr.bf16.mxu0 %v1210
        %1662 = vmatpush1.bf16.msra.mxu0 %v1209
        %1663 = vmatprep.subr.bf16.mxu0 %v1216
        %1664 = vmatpush1.bf16.msra.mxu0 %v1215
        %1665 = vmatprep.subr.bf16.mxu0 %v1222
        %1666 = vmatpush1.bf16.msra.mxu0 %v1221
        %1667 = vmatprep.subr.bf16.mxu0 %v1228
        %1668 = vmatpush1.bf16.msra.mxu0 %v1227
        %1669 = vmatprep.subr.bf16.mxu0 %v1234
        %1670 = vmatpush1.bf16.msra.mxu0 %v1233
        %1671 = vmatprep.subr.bf16.mxu0 %v1240
        %1672 = vmatpush1.bf16.msra.mxu0 %v1239
        %1673 = vmatprep.subr.bf16.mxu0 %v1246
        %1674 = vmatpush1.bf16.msra.mxu0 %v1245
        %1675 = vmatprep.mubr.bf16.mxu0 %v378
        %1676 = vmatmul.mubr.bf16.gmra.mrb[0].mxu0 %v377
        %v1677 = vpop.f32.mrb[0].mxu0
        %v1678 = vadd.f32 0.0, %v1677
        %v1679 = vpop.f32.mrb[0].mxu0
        %v1680 = vadd.f32 0.0, %v1679
        %v1681 = vpop.f32.mrb[0].mxu0
        %v1682 = vadd.f32 0.0, %v1681
        %v1683 = vpop.f32.mrb[0].mxu0
        %v1684 = vadd.f32 0.0, %v1683
        %1685 = vmatprep.mubr.bf16.mxu0 %v382
        %1686 = vmatmul.mubr.bf16.gmra.mrb[0].mxu0 %v381
        %v1687 = vpop.f32.mrb[0].mxu0
        %v1688 = vadd.f32 0.0, %v1687
        %v1689 = vpop.f32.mrb[0].mxu0
        %v1690 = vadd.f32 0.0, %v1689
        %v1691 = vpop.f32.mrb[0].mxu0
        %v1692 = vadd.f32 0.0, %v1691
        %v1693 = vpop.f32.mrb[0].mxu0
        %v1694 = vadd.f32 0.0, %v1693
        %1695 = vdwg.mxu0
        %1696 = vmatprep.subr.bf16.mxu0 %v1252
        %1697 = vmatpush1.bf16.msra.mxu0 %v1251
        %1698 = vmatprep.subr.bf16.mxu0 %v1258
        %1699 = vmatpush1.bf16.msra.mxu0 %v1257
        %1700 = vmatprep.subr.bf16.mxu0 %v1264
        %1701 = vmatpush1.bf16.msra.mxu0 %v1263
        %1702 = vmatprep.subr.bf16.mxu0 %v1270
        %1703 = vmatpush1.bf16.msra.mxu0 %v1269
        %1704 = vmatprep.subr.bf16.mxu0 %v1276
        %1705 = vmatpush1.bf16.msra.mxu0 %v1275
        %1706 = vmatprep.subr.bf16.mxu0 %v1282
        %1707 = vmatpush1.bf16.msra.mxu0 %v1281
        %1708 = vmatprep.subr.bf16.mxu0 %v1288
        %1709 = vmatpush1.bf16.msra.mxu0 %v1287
        %1710 = vmatprep.subr.bf16.mxu0 %v1294
        %1711 = vmatpush1.bf16.msra.mxu0 %v1293
        %1712 = vmatprep.subr.bf16.mxu0 %v1300
        %1713 = vmatpush1.bf16.msra.mxu0 %v1299
        %1714 = vmatprep.subr.bf16.mxu0 %v1306
        %1715 = vmatpush1.bf16.msra.mxu0 %v1305
        %1716 = vmatprep.subr.bf16.mxu0 %v1312
        %1717 = vmatpush1.bf16.msra.mxu0 %v1311
        %1718 = vmatprep.subr.bf16.mxu0 %v1318
        %1719 = vmatpush1.bf16.msra.mxu0 %v1317
        %1720 = vmatprep.subr.bf16.mxu0 %v1324
        %1721 = vmatpush1.bf16.msra.mxu0 %v1323
        %1722 = vmatprep.subr.bf16.mxu0 %v1330
        %1723 = vmatpush1.bf16.msra.mxu0 %v1329
        %1724 = vmatprep.subr.bf16.mxu0 %v1336
        %1725 = vmatpush1.bf16.msra.mxu0 %v1335
        %1726 = vmatprep.subr.bf16.mxu0 %v1342
        %1727 = vmatpush1.bf16.msra.mxu0 %v1341
        %1728 = vmatprep.mubr.bf16.mxu0 %v380
        %1729 = vmatmul.mubr.bf16.gmra.mrb[0].mxu0 %v379
        %v1730 = vpop.f32.mrb[0].mxu0
        %v1731 = vadd.f32 %v1678, %v1730
        %v1732 = vpop.f32.mrb[0].mxu0
        %v1733 = vadd.f32 %v1680, %v1732
        %v1734 = vpop.f32.mrb[0].mxu0
        %v1735 = vadd.f32 %v1682, %v1734
        %v1736 = vpop.f32.mrb[0].mxu0
        %v1737 = vadd.f32 %v1684, %v1736
        %1738 = vmatprep.mubr.bf16.mxu0 %v384
        %1739 = vmatmul.mubr.bf16.gmra.mrb[0].mxu0 %v383
        %v1740 = vpop.f32.mrb[0].mxu0
        %v1741 = vadd.f32 %v1688, %v1740
        %v1742 = vpop.f32.mrb[0].mxu0
        %v1743 = vadd.f32 %v1690, %v1742
        %v1744 = vpop.f32.mrb[0].mxu0
        %v1745 = vadd.f32 %v1692, %v1744
        %v1746 = vpop.f32.mrb[0].mxu0
        %v1747 = vadd.f32 %v1694, %v1746
        %1748 = vdwg.mxu0
        %1749 = vmatprep.subr.bf16.mxu0 %v1158
        %1750 = vmatpush1.bf16.msra.mxu0 %v1157
        %1751 = vmatprep.subr.bf16.mxu0 %v1164
        %1752 = vmatpush1.bf16.msra.mxu0 %v1163
        %1753 = vmatprep.subr.bf16.mxu0 %v1170
        %1754 = vmatpush1.bf16.msra.mxu0 %v1169
        %1755 = vmatprep.subr.bf16.mxu0 %v1176
        %1756 = vmatpush1.bf16.msra.mxu0 %v1175
        %1757 = vmatprep.subr.bf16.mxu0 %v1182
        %1758 = vmatpush1.bf16.msra.mxu0 %v1181
        %1759 = vmatprep.subr.bf16.mxu0 %v1188
        %1760 = vmatpush1.bf16.msra.mxu0 %v1187
        %1761 = vmatprep.subr.bf16.mxu0 %v1194
        %1762 = vmatpush1.bf16.msra.mxu0 %v1193
        %1763 = vmatprep.subr.bf16.mxu0 %v1200
        %1764 = vmatpush1.bf16.msra.mxu0 %v1199
        %1765 = vmatprep.subr.bf16.mxu0 %v1206
        %1766 = vmatpush1.bf16.msra.mxu0 %v1205
        %1767 = vmatprep.subr.bf16.mxu0 %v1212
        %1768 = vmatpush1.bf16.msra.mxu0 %v1211
        %1769 = vmatprep.subr.bf16.mxu0 %v1218
        %1770 = vmatpush1.bf16.msra.mxu0 %v1217
        %1771 = vmatprep.subr.bf16.mxu0 %v1224
        %1772 = vmatpush1.bf16.msra.mxu0 %v1223
        %1773 = vmatprep.subr.bf16.mxu0 %v1230
        %1774 = vmatpush1.bf16.msra.mxu0 %v1229
        %1775 = vmatprep.subr.bf16.mxu0 %v1236
        %1776 = vmatpush1.bf16.msra.mxu0 %v1235
        %1777 = vmatprep.subr.bf16.mxu0 %v1242
        %1778 = vmatpush1.bf16.msra.mxu0 %v1241
        %1779 = vmatprep.subr.bf16.mxu0 %v1248
        %1780 = vmatpush1.bf16.msra.mxu0 %v1247
        %1781 = vmatprep.mubr.bf16.mxu0 %v378
        %1782 = vmatmul.mubr.bf16.gmra.mrb[0].mxu0 %v377
        %v1783 = vpop.f32.mrb[0].mxu0
        %v1784 = vadd.f32 0.0, %v1783
        %v1785 = vpop.f32.mrb[0].mxu0
        %v1786 = vadd.f32 0.0, %v1785
        %v1787 = vpop.f32.mrb[0].mxu0
        %v1788 = vadd.f32 0.0, %v1787
        %v1789 = vpop.f32.mrb[0].mxu0
        %v1790 = vadd.f32 0.0, %v1789
        %1791 = vmatprep.mubr.bf16.mxu0 %v382
        %1792 = vmatmul.mubr.bf16.gmra.mrb[0].mxu0 %v381
        %v1793 = vpop.f32.mrb[0].mxu0
        %v1794 = vadd.f32 0.0, %v1793
        %v1795 = vpop.f32.mrb[0].mxu0
        %v1796 = vadd.f32 0.0, %v1795
        %v1797 = vpop.f32.mrb[0].mxu0
        %v1798 = vadd.f32 0.0, %v1797
        %v1799 = vpop.f32.mrb[0].mxu0
        %v1800 = vadd.f32 0.0, %v1799
        %1801 = vdwg.mxu0
        %1802 = vmatprep.subr.bf16.mxu0 %v1254
        %1803 = vmatpush1.bf16.msra.mxu0 %v1253
        %1804 = vmatprep.subr.bf16.mxu0 %v1260
        %1805 = vmatpush1.bf16.msra.mxu0 %v1259
        %1806 = vmatprep.subr.bf16.mxu0 %v1266
        %1807 = vmatpush1.bf16.msra.mxu0 %v1265
        %1808 = vmatprep.subr.bf16.mxu0 %v1272
        %1809 = vmatpush1.bf16.msra.mxu0 %v1271
        %1810 = vmatprep.subr.bf16.mxu0 %v1278
        %1811 = vmatpush1.bf16.msra.mxu0 %v1277
        %1812 = vmatprep.subr.bf16.mxu0 %v1284
        %1813 = vmatpush1.bf16.msra.mxu0 %v1283
        %1814 = vmatprep.subr.bf16.mxu0 %v1290
        %1815 = vmatpush1.bf16.msra.mxu0 %v1289
        %1816 = vmatprep.subr.bf16.mxu0 %v1296
        %1817 = vmatpush1.bf16.msra.mxu0 %v1295
        %1818 = vmatprep.subr.bf16.mxu0 %v1302
        %1819 = vmatpush1.bf16.msra.mxu0 %v1301
        %1820 = vmatprep.subr.bf16.mxu0 %v1308
        %1821 = vmatpush1.bf16.msra.mxu0 %v1307
        %1822 = vmatprep.subr.bf16.mxu0 %v1314
        %1823 = vmatpush1.bf16.msra.mxu0 %v1313
        %1824 = vmatprep.subr.bf16.mxu0 %v1320
        %1825 = vmatpush1.bf16.msra.mxu0 %v1319
        %1826 = vmatprep.subr.bf16.mxu0 %v1326
        %1827 = vmatpush1.bf16.msra.mxu0 %v1325
        %1828 = vmatprep.subr.bf16.mxu0 %v1332
        %1829 = vmatpush1.bf16.msra.mxu0 %v1331
        %1830 = vmatprep.subr.bf16.mxu0 %v1338
        %1831 = vmatpush1.bf16.msra.mxu0 %v1337
        %1832 = vmatprep.subr.bf16.mxu0 %v1344
        %1833 = vmatpush1.bf16.msra.mxu0 %v1343
        %1834 = vmatprep.mubr.bf16.mxu0 %v380
        %1835 = vmatmul.mubr.bf16.gmra.mrb[0].mxu0 %v379
        %v1836 = vpop.f32.mrb[0].mxu0
        %v1837 = vadd.f32 %v1784, %v1836
        %v1838 = vpop.f32.mrb[0].mxu0
        %v1839 = vadd.f32 %v1786, %v1838
        %v1840 = vpop.f32.mrb[0].mxu0
        %v1841 = vadd.f32 %v1788, %v1840
        %v1842 = vpop.f32.mrb[0].mxu0
        %v1843 = vadd.f32 %v1790, %v1842
        %1844 = vmatprep.mubr.bf16.mxu0 %v384
        %1845 = vmatmul.mubr.bf16.gmra.mrb[0].mxu0 %v383
        %v1846 = vpop.f32.mrb[0].mxu0
        %v1847 = vadd.f32 %v1794, %v1846
        %v1848 = vpop.f32.mrb[0].mxu0
        %v1849 = vadd.f32 %v1796, %v1848
        %v1850 = vpop.f32.mrb[0].mxu0
        %v1851 = vadd.f32 %v1798, %v1850
        %v1852 = vpop.f32.mrb[0].mxu0
        %v1853 = vadd.f32 %v1800, %v1852
        %1854 = vdwg.mxu0
        %v1855 = vmul.f32 %v1625, %v1625
        %v1856 = vmul.f32 %v1627, %v1627
        %v1857 = vmul.f32 %v1731, %v1731
        %v1858 = vmul.f32 %v1629, %v1629
        %v1859 = vmul.f32 %v1631, %v1631
        %v1860 = vmul.f32 %v1735, %v1735
        %v1861 = vmul.f32 %v1635, %v1635
        %v1862 = vmul.f32 %v1637, %v1637
        %v1863 = vmul.f32 %v1741, %v1741
        %v1864 = vmul.f32 %v1639, %v1639
        %v1865 = vmul.f32 %v1641, %v1641
        %v1866 = vmul.f32 %v1745, %v1745
        %v1867 = vmul.f32 %v1733, %v1733
        %v1868 = vmul.f32 %v1837, %v1837
        %v1869 = vmul.f32 %v1839, %v1839
        %v1870 = vmul.f32 %v1737, %v1737
        %v1871 = vmul.f32 %v1841, %v1841
        %v1872 = vmul.f32 %v1843, %v1843
        %v1873 = vmul.f32 %v1743, %v1743
        %v1874 = vmul.f32 %v1847, %v1847
        %v1875 = vmul.f32 %v1849, %v1849
        %v1876 = vmul.f32 %v1747, %v1747
        %v1877 = vmul.f32 %v1851, %v1851
        %v1878 = vmul.f32 %v1853, %v1853
        %v1879 = vadd.f32 %v1855, %v1867
        %v1880 = vadd.f32 %v1856, %v1868
        %v1881 = vadd.f32 %v1857, %v1869
        %v1882 = vadd.f32 %v1858, %v1870
        %v1883 = vadd.f32 %v1859, %v1871
        %v1884 = vadd.f32 %v1860, %v1872
        %v1885 = vadd.f32 %v1861, %v1873
        %v1886 = vadd.f32 %v1862, %v1874
        %v1887 = vadd.f32 %v1863, %v1875
        %v1888 = vadd.f32 %v1864, %v1876
        %v1889 = vadd.f32 %v1865, %v1877
        %v1890 = vadd.f32 %v1866, %v1878
        %v1891 = vrsqrt.pop %v1879
        %v1892 = vmul.f32 %v1879, %v1891
        %vm1893 = vcmp.eq.f32.partialorder %v1879, inf
        %v1894 = vsel %vm1893, %v1879, %v1892
        %vm1895 = vcmp.eq.f32.partialorder %v1879, 0.0
        %v1896 = vand.u32 %v1879, 2147483648
        %v1897 = vsel %vm1895, %v1896, %v1894
        %v1898 = vrsqrt.pop %v1880
        %v1899 = vmul.f32 %v1880, %v1898
        %vm1900 = vcmp.eq.f32.partialorder %v1880, inf
        %v1901 = vsel %vm1900, %v1880, %v1899
        %vm1902 = vcmp.eq.f32.partialorder %v1880, 0.0
        %v1903 = vand.u32 %v1880, 2147483648
        %v1904 = vsel %vm1902, %v1903, %v1901
        %v1905 = vrsqrt.pop %v1881
        %v1906 = vmul.f32 %v1881, %v1905
        %vm1907 = vcmp.eq.f32.partialorder %v1881, inf
        %v1908 = vsel %vm1907, %v1881, %v1906
        %vm1909 = vcmp.eq.f32.partialorder %v1881, 0.0
        %v1910 = vand.u32 %v1881, 2147483648
        %v1911 = vsel %vm1909, %v1910, %v1908
        %v1912 = vrsqrt.pop %v1882
        %v1913 = vmul.f32 %v1882, %v1912
        %vm1914 = vcmp.eq.f32.partialorder %v1882, inf
        %v1915 = vsel %vm1914, %v1882, %v1913
        %vm1916 = vcmp.eq.f32.partialorder %v1882, 0.0
        %v1917 = vand.u32 %v1882, 2147483648
        %v1918 = vsel %vm1916, %v1917, %v1915
        %v1919 = vrsqrt.pop %v1883
        %v1920 = vmul.f32 %v1883, %v1919
        %vm1921 = vcmp.eq.f32.partialorder %v1883, inf
        %v1922 = vsel %vm1921, %v1883, %v1920
        %vm1923 = vcmp.eq.f32.partialorder %v1883, 0.0
        %v1924 = vand.u32 %v1883, 2147483648
        %v1925 = vsel %vm1923, %v1924, %v1922
        %v1926 = vrsqrt.pop %v1884
        %v1927 = vmul.f32 %v1884, %v1926
        %vm1928 = vcmp.eq.f32.partialorder %v1884, inf
        %v1929 = vsel %vm1928, %v1884, %v1927
        %vm1930 = vcmp.eq.f32.partialorder %v1884, 0.0
        %v1931 = vand.u32 %v1884, 2147483648
        %v1932 = vsel %vm1930, %v1931, %v1929
        %v1933 = vrsqrt.pop %v1885
        %v1934 = vmul.f32 %v1885, %v1933
        %vm1935 = vcmp.eq.f32.partialorder %v1885, inf
        %v1936 = vsel %vm1935, %v1885, %v1934
        %vm1937 = vcmp.eq.f32.partialorder %v1885, 0.0
        %v1938 = vand.u32 %v1885, 2147483648
        %v1939 = vsel %vm1937, %v1938, %v1936
        %v1940 = vrsqrt.pop %v1886
        %v1941 = vmul.f32 %v1886, %v1940
        %vm1942 = vcmp.eq.f32.partialorder %v1886, inf
        %v1943 = vsel %vm1942, %v1886, %v1941
        %vm1944 = vcmp.eq.f32.partialorder %v1886, 0.0
        %v1945 = vand.u32 %v1886, 2147483648
        %v1946 = vsel %vm1944, %v1945, %v1943
        %v1947 = vrsqrt.pop %v1887
        %v1948 = vmul.f32 %v1887, %v1947
        %vm1949 = vcmp.eq.f32.partialorder %v1887, inf
        %v1950 = vsel %vm1949, %v1887, %v1948
        %vm1951 = vcmp.eq.f32.partialorder %v1887, 0.0
        %v1952 = vand.u32 %v1887, 2147483648
        %v1953 = vsel %vm1951, %v1952, %v1950
        %v1954 = vrsqrt.pop %v1888
        %v1955 = vmul.f32 %v1888, %v1954
        %vm1956 = vcmp.eq.f32.partialorder %v1888, inf
        %v1957 = vsel %vm1956, %v1888, %v1955
        %vm1958 = vcmp.eq.f32.partialorder %v1888, 0.0
        %v1959 = vand.u32 %v1888, 2147483648
        %v1960 = vsel %vm1958, %v1959, %v1957
        %v1961 = vrsqrt.pop %v1889
        %v1962 = vmul.f32 %v1889, %v1961
        %vm1963 = vcmp.eq.f32.partialorder %v1889, inf
        %v1964 = vsel %vm1963, %v1889, %v1962
        %vm1965 = vcmp.eq.f32.partialorder %v1889, 0.0
        %v1966 = vand.u32 %v1889, 2147483648
        %v1967 = vsel %vm1965, %v1966, %v1964
        %v1968 = vrsqrt.pop %v1890
        %v1969 = vmul.f32 %v1890, %v1968
        %vm1970 = vcmp.eq.f32.partialorder %v1890, inf
        %v1971 = vsel %vm1970, %v1890, %v1969
        %vm1972 = vcmp.eq.f32.partialorder %v1890, 0.0
        %v1973 = vand.u32 %v1890, 2147483648
        %v1974 = vsel %vm1972, %v1973, %v1971
        %v1975 = vpack.c.bf16 %v1918, %v1897
        %v1976 = vpack.c.bf16 %v1925, %v1904
        %v1977 = vpack.c.bf16 %v1932, %v1911
        %v1978 = vpack.c.bf16 %v1960, %v1939
        %v1979 = vpack.c.bf16 %v1967, %v1946
        %v1980 = vpack.c.bf16 %v1974, %v1953
        %v1981 = vld [vmem:[#allocation8] sm:$0xf]
        %v1982 = vld [vmem:[#allocation8 + $0x4] sm:$0xf]
        %v1983 = vld [vmem:[#allocation8 + $0x8] sm:$0xf]
        %v1984 = vld [vmem:[#allocation8 + $0xc] sm:$0xf]
        %v1985 = vld [vmem:[#allocation8 + $0x10] sm:$0xf]
        %v1986 = vld [vmem:[#allocation8 + $0x14] sm:$0xf]
        %v1987 = vld [vmem:[#allocation8 + $0x18] sm:$0xf]
        %v1988 = vld [vmem:[#allocation8 + $0x1c] sm:$0xf]
        %v1989 = vld [vmem:[#allocation8 + $0x20] sm:$0xf]
        %v1990 = vld [vmem:[#allocation8 + $0x24] sm:$0xf]
        %v1991 = vld [vmem:[#allocation8 + $0x28] sm:$0xf]
        %v1992 = vld [vmem:[#allocation8 + $0x2c] sm:$0xf]
        %v1993 = vld [vmem:[#allocation8 + $0x30] sm:$0xf]
        %v1994 = vld [vmem:[#allocation8 + $0x34] sm:$0xf]
        %v1995 = vld [vmem:[#allocation8 + $0x38] sm:$0xf]
        %v1996 = vld [vmem:[#allocation8 + $0x3c] sm:$0xf]
        %v1997 = vld [vmem:[#allocation8 + $0x40] sm:$0xf]
        %v1998 = vld [vmem:[#allocation8 + $0x44] sm:$0xf]
        %v1999 = vld [vmem:[#allocation8 + $0x48] sm:$0xf]
        %v2000 = vld [vmem:[#allocation8 + $0x4c] sm:$0xf]
        %v2001 = vld [vmem:[#allocation8 + $0x50] sm:$0xf]
        %v2002 = vld [vmem:[#allocation8 + $0x54] sm:$0xf]
        %v2003 = vld [vmem:[#allocation8 + $0x58] sm:$0xf]
        %v2004 = vld [vmem:[#allocation8 + $0x5c] sm:$0xf]
        %v2005 = vld [vmem:[#allocation8 + $0x60] sm:$0xf]
        %v2006 = vld [vmem:[#allocation8 + $0x64] sm:$0xf]
        %v2007 = vld [vmem:[#allocation8 + $0x68] sm:$0xf]
        %v2008 = vld [vmem:[#allocation8 + $0x6c] sm:$0xf]
        %v2009 = vld [vmem:[#allocation8 + $0x70] sm:$0xf]
        %v2010 = vld [vmem:[#allocation8 + $0x74] sm:$0xf]
        %v2011 = vld [vmem:[#allocation8 + $0x78] sm:$0xf]
        %v2012 = vld [vmem:[#allocation8 + $0x7c] sm:$0xf]
        %v2013 = vld [vmem:[#allocation8 + $0x80] sm:$0xf]
        %v2014 = vld [vmem:[#allocation8 + $0x84] sm:$0xf]
        %v2015 = vld [vmem:[#allocation8 + $0x88] sm:$0xf]
        %v2016 = vld [vmem:[#allocation8 + $0x8c] sm:$0xf]
        %v2017 = vld [vmem:[#allocation8 + $0x90] sm:$0xf]
        %v2018 = vld [vmem:[#allocation8 + $0x94] sm:$0xf]
        %v2019 = vld [vmem:[#allocation8 + $0x98] sm:$0xf]
        %v2020 = vld [vmem:[#allocation8 + $0x9c] sm:$0xf]
        %v2021 = vld [vmem:[#allocation8 + $0xa0] sm:$0xf]
        %v2022 = vld [vmem:[#allocation8 + $0xa4] sm:$0xf]
        %v2023 = vld [vmem:[#allocation8 + $0xa8] sm:$0xf]
        %v2024 = vld [vmem:[#allocation8 + $0xac] sm:$0xf]
        %v2025 = vld [vmem:[#allocation8 + $0xb0] sm:$0xf]
        %v2026 = vld [vmem:[#allocation8 + $0xb4] sm:$0xf]
        %v2027 = vld [vmem:[#allocation8 + $0xb8] sm:$0xf]
        %v2028 = vld [vmem:[#allocation8 + $0xbc] sm:$0xf]
        %v2077 = vunpack.c.l.b16 %v1981
        %v2078 = vunpack.c.l.b16 %v1982
        %v2079 = vunpack.c.l.b16 %v1983
        %v2080 = vunpack.c.l.b16 %v1984
        %v2081 = vunpack.c.l.b16 %v1985
        %v2082 = vunpack.c.l.b16 %v1986
        %v2083 = vunpack.c.l.b16 %v1987
        %v2084 = vunpack.c.l.b16 %v1988
        %v2085 = vunpack.c.l.b16 %v1989
        %v2086 = vunpack.c.l.b16 %v1990
        %v2087 = vunpack.c.l.b16 %v1991
        %v2088 = vunpack.c.l.b16 %v1992
        %v2089 = vunpack.c.l.b16 %v1993
        %v2090 = vunpack.c.l.b16 %v1994
        %v2091 = vunpack.c.l.b16 %v1995
        %v2092 = vunpack.c.l.b16 %v1996
        %v2093 = vunpack.c.l.b16 %v1997
        %v2094 = vunpack.c.l.b16 %v1998
        %v2095 = vunpack.c.l.b16 %v1999
        %v2096 = vunpack.c.l.b16 %v2000
        %v2097 = vunpack.c.l.b16 %v2001
        %v2098 = vunpack.c.l.b16 %v2002
        %v2099 = vunpack.c.l.b16 %v2003
        %v2100 = vunpack.c.l.b16 %v2004
        %v2101 = vunpack.c.l.b16 %v2005
        %v2102 = vunpack.c.l.b16 %v2006
        %v2103 = vunpack.c.l.b16 %v2007
        %v2104 = vunpack.c.l.b16 %v2008
        %v2105 = vunpack.c.l.b16 %v2009
        %v2106 = vunpack.c.l.b16 %v2010
        %v2107 = vunpack.c.l.b16 %v2011
        %v2108 = vunpack.c.l.b16 %v2012
        %v2109 = vunpack.c.l.b16 %v2013
        %v2110 = vunpack.c.l.b16 %v2014
        %v2111 = vunpack.c.l.b16 %v2015
        %v2112 = vunpack.c.l.b16 %v2016
        %v2113 = vunpack.c.l.b16 %v2017
        %v2114 = vunpack.c.l.b16 %v2018
        %v2115 = vunpack.c.l.b16 %v2019
        %v2116 = vunpack.c.l.b16 %v2020
        %v2117 = vunpack.c.l.b16 %v2021
        %v2118 = vunpack.c.l.b16 %v2022
        %v2119 = vunpack.c.l.b16 %v2023
        %v2120 = vunpack.c.l.b16 %v2024
        %v2121 = vunpack.c.l.b16 %v2025
        %v2122 = vunpack.c.l.b16 %v2026
        %v2123 = vunpack.c.l.b16 %v2027
        %v2124 = vunpack.c.l.b16 %v2028
        %v2125 = vpack.c.b16 %v2078, %v2077
        %v2126 = vpack.c.b16 %v2080, %v2079
        %v2127 = vpack.c.b16 %v2082, %v2081
        %v2128 = vpack.c.b16 %v2084, %v2083
        %v2129 = vpack.c.b16 %v2086, %v2085
        %v2130 = vpack.c.b16 %v2088, %v2087
        %v2131 = vpack.c.b16 %v2090, %v2089
        %v2132 = vpack.c.b16 %v2092, %v2091
        %v2133 = vpack.c.b16 %v2094, %v2093
        %v2134 = vpack.c.b16 %v2096, %v2095
        %v2135 = vpack.c.b16 %v2098, %v2097
        %v2136 = vpack.c.b16 %v2100, %v2099
        %v2137 = vpack.c.b16 %v2102, %v2101
        %v2138 = vpack.c.b16 %v2104, %v2103
        %v2139 = vpack.c.b16 %v2106, %v2105
        %v2140 = vpack.c.b16 %v2108, %v2107
        %v2141 = vpack.c.b16 %v2110, %v2109
        %v2142 = vpack.c.b16 %v2112, %v2111
        %v2143 = vpack.c.b16 %v2114, %v2113
        %v2144 = vpack.c.b16 %v2116, %v2115
        %v2145 = vpack.c.b16 %v2118, %v2117
        %v2146 = vpack.c.b16 %v2120, %v2119
        %v2147 = vpack.c.b16 %v2122, %v2121
        %v2148 = vpack.c.b16 %v2124, %v2123
        %2173 = vmatprep.subr.bf16.mxu0 0
        %2174 = vmatpush1.bf16.msra.mxu0 %v2125
        %2175 = vmatprep.subr.bf16.mxu0 0
        %2176 = vmatpush1.bf16.msra.mxu0 %v2126
        %2177 = vmatprep.subr.bf16.mxu0 0
        %2178 = vmatpush1.bf16.msra.mxu0 %v2127
        %2179 = vmatprep.subr.bf16.mxu0 0
        %2180 = vmatpush1.bf16.msra.mxu0 %v2128
        %2181 = vmatprep.subr.bf16.mxu0 0
        %2182 = vmatpush1.bf16.msra.mxu0 %v2129
        %2183 = vmatprep.subr.bf16.mxu0 0
        %2184 = vmatpush1.bf16.msra.mxu0 %v2130
        %2185 = vmatprep.subr.bf16.mxu0 0
        %2186 = vmatpush1.bf16.msra.mxu0 %v2131
        %2187 = vmatprep.subr.bf16.mxu0 0
        %2188 = vmatpush1.bf16.msra.mxu0 %v2132
        %2189 = vmatprep.subr.bf16.mxu0 0
        %2190 = vmatpush1.bf16.msra.mxu0 %v2133
        %2191 = vmatprep.subr.bf16.mxu0 0
        %2192 = vmatpush1.bf16.msra.mxu0 %v2134
        %2193 = vmatprep.subr.bf16.mxu0 0
        %2194 = vmatpush1.bf16.msra.mxu0 %v2135
        %2195 = vmatprep.subr.bf16.mxu0 0
        %2196 = vmatpush1.bf16.msra.mxu0 %v2136
        %2197 = vmatprep.subr.bf16.mxu0 0
        %2198 = vmatpush1.bf16.msra.mxu0 %v2137
        %2199 = vmatprep.subr.bf16.mxu0 0
        %2200 = vmatpush1.bf16.msra.mxu0 %v2138
        %2201 = vmatprep.subr.bf16.mxu0 0
        %2202 = vmatpush1.bf16.msra.mxu0 %v2139
        %2203 = vmatprep.subr.bf16.mxu0 0
        %2204 = vmatpush1.bf16.msra.mxu0 %v2140
        %2205 = vmatprep.mubr.bf16.mxu0 %v1976
        %2206 = vmatmul.mubr.bf16.gmra.mrb[0].mxu0 %v1975
        %v2207 = vpop.f32.mrb[0].mxu0
        %v2208 = vadd.f32 0.0, %v2207
        %v2209 = vpop.f32.mrb[0].mxu0
        %v2210 = vpop.f32.mrb[0].mxu0
        %v2211 = vadd.f32 0.0, %v2210
        %v2212 = vpop.f32.mrb[0].mxu0
        %2213 = vmatprep.mubr.bf16.mxu0 %v1979
        %2214 = vmatmul.mubr.bf16.gmra.mrb[0].mxu0 %v1978
        %v2215 = vpop.f32.mrb[0].mxu0
        %v2216 = vadd.f32 0.0, %v2215
        %v2217 = vpop.f32.mrb[0].mxu0
        %v2218 = vpop.f32.mrb[0].mxu0
        %v2219 = vadd.f32 0.0, %v2218
        %v2220 = vpop.f32.mrb[0].mxu0
        %2221 = vdwg.mxu0
        %2222 = vmatprep.subr.bf16.mxu0 0
        %2223 = vmatpush1.bf16.msra.mxu0 %v2141
        %2224 = vmatprep.subr.bf16.mxu0 0
        %2225 = vmatpush1.bf16.msra.mxu0 %v2142
        %2226 = vmatprep.subr.bf16.mxu0 0
        %2227 = vmatpush1.bf16.msra.mxu0 %v2143
        %2228 = vmatprep.subr.bf16.mxu0 0
        %2229 = vmatpush1.bf16.msra.mxu0 %v2144
        %2230 = vmatprep.subr.bf16.mxu0 0
        %2231 = vmatpush1.bf16.msra.mxu0 %v2145
        %2232 = vmatprep.subr.bf16.mxu0 0
        %2233 = vmatpush1.bf16.msra.mxu0 %v2146
        %2234 = vmatprep.subr.bf16.mxu0 0
        %2235 = vmatpush1.bf16.msra.mxu0 %v2147
        %2236 = vmatprep.subr.bf16.mxu0 0
        %2237 = vmatpush1.bf16.msra.mxu0 %v2148
        %2238 = vmatprep.subr.bf16.mxu0 0
        %2239 = vmatpush1.bf16.msra.mxu0 0
        %2240 = vmatprep.subr.bf16.mxu0 0
        %2241 = vmatpush1.bf16.msra.mxu0 0
        %2242 = vmatprep.subr.bf16.mxu0 0
        %2243 = vmatpush1.bf16.msra.mxu0 0
        %2244 = vmatprep.subr.bf16.mxu0 0
        %2245 = vmatpush1.bf16.msra.mxu0 0
        %2246 = vmatprep.subr.bf16.mxu0 0
        %2247 = vmatpush1.bf16.msra.mxu0 0
        %2248 = vmatprep.subr.bf16.mxu0 0
        %2249 = vmatpush1.bf16.msra.mxu0 0
        %2250 = vmatprep.subr.bf16.mxu0 0
        %2251 = vmatpush1.bf16.msra.mxu0 0
        %2252 = vmatprep.subr.bf16.mxu0 0
        %2253 = vmatpush1.bf16.msra.mxu0 0
        %2254 = vmatprep.mubr.bf16.mxu0 0
        %2255 = vmatmul.mubr.bf16.gmra.mrb[0].mxu0 %v1977
        %v2256 = vpop.f32.mrb[0].mxu0
        %v2257 = vadd.f32 %v2208, %v2256
        %v2258 = vpop.f32.mrb[0].mxu0
        %v2259 = vpop.f32.mrb[0].mxu0
        %v2260 = vadd.f32 %v2211, %v2259
        %v2261 = vpop.f32.mrb[0].mxu0
        %2262 = vmatprep.mubr.bf16.mxu0 0
        %2263 = vmatmul.mubr.bf16.gmra.mrb[0].mxu0 %v1980
        %v2264 = vpop.f32.mrb[0].mxu0
        %v2265 = vadd.f32 %v2216, %v2264
        %v2266 = vpop.f32.mrb[0].mxu0
        %v2267 = vpop.f32.mrb[0].mxu0
        %v2268 = vadd.f32 %v2219, %v2267
        %v2269 = vpop.f32.mrb[0].mxu0
        %2270 = vdwg.mxu0
        %v2271 = vmax.f32 %v2257, 1e-05
        %v2272 = vmax.f32 %v2260, 1e-05
        %v2273 = vmax.f32 %v2265, 1e-05
        %v2274 = vmax.f32 %v2268, 1e-05
        %v2275 = vlog2.pop %v2271
        %v2276 = vmul.f32 %v2275, 0.6931472
        %v2277 = vlog2.pop %v2272
        %v2278 = vmul.f32 %v2277, 0.6931472
        %v2279 = vlog2.pop %v2273
        %v2280 = vmul.f32 %v2279, 0.6931472
        %v2281 = vlog2.pop %v2274
        %v2282 = vmul.f32 %v2281, 0.6931472
        %v2283 = vmul.f32 %v2276, 0.4342945
        %v2284 = vmul.f32 %v2278, 0.4342945
        %v2285 = vmul.f32 %v2280, 0.4342945
        %v2286 = vmul.f32 %v2282, 0.4342945
        %2287 = vst [vmem:[%s315] sm:$0xff] %v2283
        %2288 = vst [vmem:[%s315 + $0x8] sm:$0xff] %v2284
        %2289 = vst [vmem:[%s315 + $0x10] sm:$0xff] %v2285
        %2290 = vst [vmem:[%s315 + $0x18] sm:$0xff] %v2286
        %s2291 = sand.u32 %s149, 1
        %s2292 = scalar_lea.sflag [#allocation4], %s2291
        %s2293 = sand.u32 %s149, 1
        %s2294 = smul.addr %s2293, 32
        %s2295 = scalar_lea.vmem [#allocation10], %s2294
        // Predicated region
        $region53: #{tpu_custom_call.1} parent=35 // pred_check
          %p2296 = pneg %p159
        $region54: #{tpu_custom_call.1} parent=35 // pred_check_branch
          %2298 = sbr.rel (%p2296) target = $region56
        $region55: #{tpu_custom_call.1} parent=35 // pred_region
          %s2299 = smul.u32 4, %s30
          %s2301 = ssub.s32 512, 512
          %2302 = vsyncadd %s2292, %s2301
          %s2303 = smul.addr %s29, 4
          %s2304 = sadd.s32 %s2299, %s2303
          %s2305 = smul.addr %s2304, 128
          %s2306 = scalar_lea.hbm %s4, %s2305
          %s2307 = sshll.u32 %s2295, 4
          %s2308 = int_to_ptr.vmem [resolvable:$true] %s2307
          %2313 = dma.vmem_to_hbm [thread:$0]  %s2308, 512, %s2306, %s2292, 128, 128, 8
        $region56: #{tpu_custom_call.1} parent=35 // pred_fallthru
          _
      $region36: #{tpu_custom_call.1} parent=5 // pred_fallthru
        _
      %p2314 = scmp.le.s32.totalorder 2, %s20
      // Predicated region
      $region57: #{tpu_custom_call.1} parent=5 // pred_check
        %p2315 = pneg %p2314
      $region58: #{tpu_custom_call.1} parent=5 // pred_check_branch
        %2317 = sbr.rel (%p2315) target = $region60
      $region59: #{tpu_custom_call.1} parent=5 // pred_region
        %s2318 = ssub.s32 %s20, 2
        // Predicated region
        $region61: #{tpu_custom_call.1} parent=59 // pred_check
          %p2319 = pneg %p165
        $region62: #{tpu_custom_call.1} parent=59 // pred_check_branch
          %2321 = sbr.rel (%p2319) target = $region64
        $region63: #{tpu_custom_call.1} parent=59 // pred_region
          %s2322 = sand.u32 %s150, 1
          %s2323 = scalar_lea.sflag [#allocation4], %s2322
          %s2324 = sand.u32 %s150, 1
          %s2325 = smul.addr %s2324, 32
          %s2326 = scalar_lea.vmem [#allocation10], %s2325
          %2327 = dma.done %s2323, 512
        $region64: #{tpu_custom_call.1} parent=59 // pred_fallthru
          _
      $region60: #{tpu_custom_call.1} parent=5 // pred_fallthru
        _
    $region6: #{tpu_custom_call.1} parent=1 // loop_footer
      %s24 = sadd.s32 1, %s20
    $region7: #{tpu_custom_call.1} parent=1 // loop_footer_branch
      %19 = sbr.rel target = $region3
    $region8: #{tpu_custom_call.1} parent=1 // loop_exit
      _
    %2328 = vsyncpa [#allocation3], 1
    %s2329 = scalar_lea.sflag [#allocation3], 1
    %2330 = vsyncpa %s2329, 1
    %2331 = vsyncpa [#allocation6], 1
    %s2332 = scalar_lea.sflag [#allocation6], 1
    %2333 = vsyncpa %s2332, 1
    %2334 = vsyncpa [#allocation9], 1
    %2335 = vsyncpa [#allocation4], 1
    %s2336 = scalar_lea.sflag [#allocation4], 1
    %2337 = vsyncpa %s2336, 1

</llo_original>
